<compile_context>
chip_gen: v7x
topology: tpu7x:2x2x1
jax: 0.10.0
libtpu: 0.0.40
codegen_flags: <defaults>
</compile_context>

<pallas_src>
import functools

import jax
import jax.numpy as jnp
import numpy as np
from jax.experimental import pallas as pl
from jax.experimental.pallas import tpu as pltpu

N_IN, N_H, N_OUT = 5, 10, 2
LANES = 128

# Offsets into the packed parameter vector (row-major [out, in] weights).
W1_OFF = 0
B1_OFF = W1_OFF + N_H * N_IN      # 50
W2_OFF = B1_OFF + N_H             # 60
B2_OFF = W2_OFF + N_H * N_H       # 160
W3_OFF = B2_OFF + N_H             # 170
B3_OFF = W3_OFF + N_OUT * N_H     # 190
Y_OFF = B3_OFF + N_OUT            # 192
N_PARAMS = Y_OFF + N_OUT          # 194


def _tree_sum(terms):
    """Pairwise-balanced sum: shorter VALU dependency chain than a running acc."""
    while len(terms) > 1:
        nxt = [terms[i] + terms[i + 1] for i in range(0, len(terms) - 1, 2)]
        if len(terms) % 2:
            nxt.append(terms[-1])
        terms = nxt
    return terms[0]


def _mlp_kernel(p_ref, x_ref, o_ref):
    """p_ref: f32[194] (SMEM).  x_ref: f32[5, TR, 128].  o_ref: f32[2, TR, 128]."""

    def dense(inputs, w_off, b_off, n_in, n_out, act):
        # Fully unrolled: each output plane is a sum of scalar-scaled input
        # planes (pure VPU work, no MXU fill/drain for 5/10-wide layers).
        outs = []
        for o in range(n_out):
            prods = [inputs[i] * p_ref[w_off + o * n_in + i] for i in range(n_in)]
            outs.append(act(_tree_sum(prods) + p_ref[b_off + o]))
        return outs

    relu = lambda v: jnp.maximum(v, 0.0)

    x = [x_ref[i] for i in range(N_IN)]                      # 5 lane-dense planes
    h1 = dense(x, W1_OFF, B1_OFF, N_IN, N_H, relu)           # Linear(5,10)+ReLU
    h2 = dense(h1, W2_OFF, B2_OFF, N_H, N_H, relu)           # Linear(10,10)+ReLU
    y = dense(h2, W3_OFF, B3_OFF, N_H, N_OUT, jnp.tanh)      # Linear(10,2)+Tanh (EUP)
    for o in range(N_OUT):
        o_ref[o] = y[o] * p_ref[Y_OFF + o]                   # * y_max


@functools.partial(jax.jit, static_argnames=("tile_rows",))
def neural_network_forward(x, packed_params, *, tile_rows=16):
    """x: f32[B, 5] raw (un-normalized) inputs.  Returns f32[B, 2]."""
    B = x.shape[0]
    rows_needed = -(-B // LANES)                    # ceil(B / 128)
    # Tile adapts to the batch: small batches run in one step with minimal
    # padding; large batches use `tile_rows` sublanes per step to amortize
    # the fixed per-grid-step overhead.  `tr` is always a multiple of 8
    # (sublane tiling) unless it equals the whole (padded) array.
    tr = min(tile_rows, 8 * (-(-rows_needed // 8)))
    rows = (-(-rows_needed // tr)) * tr
    B_pad = rows * LANES
    if B_pad != B:
        x = jnp.pad(x, ((0, B_pad - B), (0, 0)))

    # Batch onto (sublane, lane): [B_pad, 5] -> [5, rows, 128] (lane-dense).
    xt = x.T.reshape(N_IN, rows, LANES)

    out = pl.pallas_call(
        _mlp_kernel,
        out_shape=jax.ShapeDtypeStruct((N_OUT, rows, LANES), jnp.float32),
        grid=(rows // tr,),
        in_specs=[
            # One flat parameter slab, SMEM-resident across all grid steps.
            pl.BlockSpec(memory_space=pltpu.MemorySpace.SMEM),
            pl.BlockSpec((N_IN, tr, LANES), lambda g: (0, g, 0)),
        ],
        out_specs=pl.BlockSpec((N_OUT, tr, LANES), lambda g: (0, g, 0)),
        compiler_params=pltpu.CompilerParams(
            dimension_semantics=("parallel",)),     # shard batch axis across TCs (v7x)
    )(packed_params, xt)

    # [2, rows, 128] -> [B_pad, 2] -> [B, 2]
    return out.reshape(N_OUT, B_pad).T[:B]


def init_params(key):
    """Deterministic params matching the PyTorch module's shapes/init scheme."""
    ks = jax.random.split(key, 6)

    def linear(kw, kb, fan_in, fan_out):
        bound = 1.0 / np.sqrt(fan_in)
        w = jax.random.uniform(kw, (fan_out, fan_in), jnp.float32, -bound, bound)
        b = jax.random.uniform(kb, (fan_out,), jnp.float32, -bound, bound)
        return w, b

    w1, b1 = linear(ks[0], ks[1], 5, 10)
    w2, b2 = linear(ks[2], ks[3], 10, 10)
    w3, b3 = linear(ks[4], ks[5], 10, 2)
    x_max = jnp.array([1920.0, 1080.0, 1920.0, 1080.0, 20.0], jnp.float32)
    y_max = jnp.array([10.0, 10.0], jnp.float32)
    return dict(w1=w1, b1=b1, w2=w2, b2=b2, w3=w3, b3=b3, x_max=x_max, y_max=y_max)


def pack_params(p):
    """Fold x_max into W1 and pack everything into one flat f32[194] vector."""
    w1_scaled = p["w1"] / p["x_max"][None, :]   # (x/x_max) @ W1.T == x @ (W1/x_max).T
    packed = jnp.concatenate([
        w1_scaled.reshape(-1), p["b1"],
        p["w2"].reshape(-1), p["b2"],
        p["w3"].reshape(-1), p["b3"],
        p["y_max"],
    ]).astype(jnp.float32)
    assert packed.shape == (N_PARAMS,)
    return packed


def reference_forward(x, p):
    h = x / p["x_max"]
    h = jnp.maximum(h @ p["w1"].T + p["b1"], 0.0)
    h = jnp.maximum(h @ p["w2"].T + p["b2"], 0.0)
    return jnp.tanh(h @ p["w3"].T + p["b3"]) * p["y_max"]


if __name__ == "__main__":
    root = jax.random.PRNGKey(0)
    k_params, k_x = jax.random.split(root)

    params = init_params(k_params)
    packed = pack_params(params)

    # Small batch of raw (un-normalized) inputs; B deliberately not a multiple
    # of 128 so the padding path is exercised.
    B = 300
    scale = jnp.array([1920.0, 1080.0, 1920.0, 1080.0, 20.0], jnp.float32)
    x = jax.random.uniform(k_x, (B, N_IN), jnp.float32) * scale

    out = neural_network_forward(x, packed)
    out = jax.block_until_ready(out)

    ref = reference_forward(x, params)
    assert out.shape == (B, N_OUT)
    np.testing.assert_allclose(np.asarray(out), np.asarray(ref), rtol=1e-4, atol=1e-4)

    print("KERNEL_OK")
</pallas_src>

<mosaic_0001>
module attributes {stable_mosaic.version = 11 : i64} {
  func.func @_mlp_kernel(%arg0: i32, %arg1: memref<194xf32, #tpu.memory_space<smem>>, %arg2: memref<5x8x128xf32, #tpu.memory_space<vmem>>, %arg3: memref<2x8x128xf32, #tpu.memory_space<vmem>>) attributes {dimension_semantics = [#tpu.dimension_semantics<parallel>], iteration_bounds = array<i64: 1>, scalar_prefetch = 0 : i64, scratch_operands = 0 : i64, tpu.core_type = #tpu.core_type<tc>, window_params = [{transform_indices = @transform_0, window_bounds = array<i64: 194>}, {transform_indices = @transform_1, window_bounds = array<i64: 5, 8, 128>}, {transform_indices = @transform_2, window_bounds = array<i64: 2, 8, 128>}]} {
    %c0 = arith.constant 0 : index
    %c0_0 = arith.constant 0 : index
    %c0_1 = arith.constant 0 : index
    %0 = vector.load %arg2[%c0, %c0_0, %c0_1] : memref<5x8x128xf32, #tpu.memory_space<vmem>>, vector<1x8x128xf32>
    %1 = vector.shape_cast %0 : vector<1x8x128xf32> to vector<8x128xf32>
    %c1 = arith.constant 1 : index
    %c0_2 = arith.constant 0 : index
    %c0_3 = arith.constant 0 : index
    %2 = vector.load %arg2[%c1, %c0_2, %c0_3] : memref<5x8x128xf32, #tpu.memory_space<vmem>>, vector<1x8x128xf32>
    %3 = vector.shape_cast %2 : vector<1x8x128xf32> to vector<8x128xf32>
    %c2 = arith.constant 2 : index
    %c0_4 = arith.constant 0 : index
    %c0_5 = arith.constant 0 : index
    %4 = vector.load %arg2[%c2, %c0_4, %c0_5] : memref<5x8x128xf32, #tpu.memory_space<vmem>>, vector<1x8x128xf32>
    %5 = vector.shape_cast %4 : vector<1x8x128xf32> to vector<8x128xf32>
    %c3 = arith.constant 3 : index
    %c0_6 = arith.constant 0 : index
    %c0_7 = arith.constant 0 : index
    %6 = vector.load %arg2[%c3, %c0_6, %c0_7] : memref<5x8x128xf32, #tpu.memory_space<vmem>>, vector<1x8x128xf32>
    %7 = vector.shape_cast %6 : vector<1x8x128xf32> to vector<8x128xf32>
    %c4 = arith.constant 4 : index
    %c0_8 = arith.constant 0 : index
    %c0_9 = arith.constant 0 : index
    %8 = vector.load %arg2[%c4, %c0_8, %c0_9] : memref<5x8x128xf32, #tpu.memory_space<vmem>>, vector<1x8x128xf32>
    %9 = vector.shape_cast %8 : vector<1x8x128xf32> to vector<8x128xf32>
    %c0_10 = arith.constant 0 : index
    %10 = memref.load %arg1[%c0_10] : memref<194xf32, #tpu.memory_space<smem>>
    %11 = vector.broadcast %10 : f32 to vector<8x128xf32>
    %12 = arith.mulf %1, %11 : vector<8x128xf32>
    %c1_11 = arith.constant 1 : index
    %13 = memref.load %arg1[%c1_11] : memref<194xf32, #tpu.memory_space<smem>>
    %14 = vector.broadcast %13 : f32 to vector<8x128xf32>
    %15 = arith.mulf %3, %14 : vector<8x128xf32>
    %c2_12 = arith.constant 2 : index
    %16 = memref.load %arg1[%c2_12] : memref<194xf32, #tpu.memory_space<smem>>
    %17 = vector.broadcast %16 : f32 to vector<8x128xf32>
    %18 = arith.mulf %5, %17 : vector<8x128xf32>
    %c3_13 = arith.constant 3 : index
    %19 = memref.load %arg1[%c3_13] : memref<194xf32, #tpu.memory_space<smem>>
    %20 = vector.broadcast %19 : f32 to vector<8x128xf32>
    %21 = arith.mulf %7, %20 : vector<8x128xf32>
    %c4_14 = arith.constant 4 : index
    %22 = memref.load %arg1[%c4_14] : memref<194xf32, #tpu.memory_space<smem>>
    %23 = vector.broadcast %22 : f32 to vector<8x128xf32>
    %24 = arith.mulf %9, %23 : vector<8x128xf32>
    %25 = arith.addf %12, %15 : vector<8x128xf32>
    %26 = arith.addf %18, %21 : vector<8x128xf32>
    %27 = arith.addf %25, %26 : vector<8x128xf32>
    %28 = arith.addf %27, %24 : vector<8x128xf32>
    %c50 = arith.constant 50 : index
    %29 = memref.load %arg1[%c50] : memref<194xf32, #tpu.memory_space<smem>>
    %30 = vector.broadcast %29 : f32 to vector<8x128xf32>
    %31 = arith.addf %28, %30 : vector<8x128xf32>
    %cst = arith.constant 0.000000e+00 : f32
    %32 = vector.broadcast %cst : f32 to vector<8x128xf32>
    %33 = arith.maximumf %31, %32 : vector<8x128xf32>
    %c5 = arith.constant 5 : index
    %34 = memref.load %arg1[%c5] : memref<194xf32, #tpu.memory_space<smem>>
    %35 = vector.broadcast %34 : f32 to vector<8x128xf32>
    %36 = arith.mulf %1, %35 : vector<8x128xf32>
    %c6 = arith.constant 6 : index
    %37 = memref.load %arg1[%c6] : memref<194xf32, #tpu.memory_space<smem>>
    %38 = vector.broadcast %37 : f32 to vector<8x128xf32>
    %39 = arith.mulf %3, %38 : vector<8x128xf32>
    %c7 = arith.constant 7 : index
    %40 = memref.load %arg1[%c7] : memref<194xf32, #tpu.memory_space<smem>>
    %41 = vector.broadcast %40 : f32 to vector<8x128xf32>
    %42 = arith.mulf %5, %41 : vector<8x128xf32>
    %c8 = arith.constant 8 : index
    %43 = memref.load %arg1[%c8] : memref<194xf32, #tpu.memory_space<smem>>
    %44 = vector.broadcast %43 : f32 to vector<8x128xf32>
    %45 = arith.mulf %7, %44 : vector<8x128xf32>
    %c9 = arith.constant 9 : index
    %46 = memref.load %arg1[%c9] : memref<194xf32, #tpu.memory_space<smem>>
    %47 = vector.broadcast %46 : f32 to vector<8x128xf32>
    %48 = arith.mulf %9, %47 : vector<8x128xf32>
    %49 = arith.addf %36, %39 : vector<8x128xf32>
    %50 = arith.addf %42, %45 : vector<8x128xf32>
    %51 = arith.addf %49, %50 : vector<8x128xf32>
    %52 = arith.addf %51, %48 : vector<8x128xf32>
    %c51 = arith.constant 51 : index
    %53 = memref.load %arg1[%c51] : memref<194xf32, #tpu.memory_space<smem>>
    %54 = vector.broadcast %53 : f32 to vector<8x128xf32>
    %55 = arith.addf %52, %54 : vector<8x128xf32>
    %cst_15 = arith.constant 0.000000e+00 : f32
    %56 = vector.broadcast %cst_15 : f32 to vector<8x128xf32>
    %57 = arith.maximumf %55, %56 : vector<8x128xf32>
    %c10 = arith.constant 10 : index
    %58 = memref.load %arg1[%c10] : memref<194xf32, #tpu.memory_space<smem>>
    %59 = vector.broadcast %58 : f32 to vector<8x128xf32>
    %60 = arith.mulf %1, %59 : vector<8x128xf32>
    %c11 = arith.constant 11 : index
    %61 = memref.load %arg1[%c11] : memref<194xf32, #tpu.memory_space<smem>>
    %62 = vector.broadcast %61 : f32 to vector<8x128xf32>
    %63 = arith.mulf %3, %62 : vector<8x128xf32>
    %c12 = arith.constant 12 : index
    %64 = memref.load %arg1[%c12] : memref<194xf32, #tpu.memory_space<smem>>
    %65 = vector.broadcast %64 : f32 to vector<8x128xf32>
    %66 = arith.mulf %5, %65 : vector<8x128xf32>
    %c13 = arith.constant 13 : index
    %67 = memref.load %arg1[%c13] : memref<194xf32, #tpu.memory_space<smem>>
    %68 = vector.broadcast %67 : f32 to vector<8x128xf32>
    %69 = arith.mulf %7, %68 : vector<8x128xf32>
    %c14 = arith.constant 14 : index
    %70 = memref.load %arg1[%c14] : memref<194xf32, #tpu.memory_space<smem>>
    %71 = vector.broadcast %70 : f32 to vector<8x128xf32>
    %72 = arith.mulf %9, %71 : vector<8x128xf32>
    %73 = arith.addf %60, %63 : vector<8x128xf32>
    %74 = arith.addf %66, %69 : vector<8x128xf32>
    %75 = arith.addf %73, %74 : vector<8x128xf32>
    %76 = arith.addf %75, %72 : vector<8x128xf32>
    %c52 = arith.constant 52 : index
    %77 = memref.load %arg1[%c52] : memref<194xf32, #tpu.memory_space<smem>>
    %78 = vector.broadcast %77 : f32 to vector<8x128xf32>
    %79 = arith.addf %76, %78 : vector<8x128xf32>
    %cst_16 = arith.constant 0.000000e+00 : f32
    %80 = vector.broadcast %cst_16 : f32 to vector<8x128xf32>
    %81 = arith.maximumf %79, %80 : vector<8x128xf32>
    %c15 = arith.constant 15 : index
    %82 = memref.load %arg1[%c15] : memref<194xf32, #tpu.memory_space<smem>>
    %83 = vector.broadcast %82 : f32 to vector<8x128xf32>
    %84 = arith.mulf %1, %83 : vector<8x128xf32>
    %c16 = arith.constant 16 : index
    %85 = memref.load %arg1[%c16] : memref<194xf32, #tpu.memory_space<smem>>
    %86 = vector.broadcast %85 : f32 to vector<8x128xf32>
    %87 = arith.mulf %3, %86 : vector<8x128xf32>
    %c17 = arith.constant 17 : index
    %88 = memref.load %arg1[%c17] : memref<194xf32, #tpu.memory_space<smem>>
    %89 = vector.broadcast %88 : f32 to vector<8x128xf32>
    %90 = arith.mulf %5, %89 : vector<8x128xf32>
    %c18 = arith.constant 18 : index
    %91 = memref.load %arg1[%c18] : memref<194xf32, #tpu.memory_space<smem>>
    %92 = vector.broadcast %91 : f32 to vector<8x128xf32>
    %93 = arith.mulf %7, %92 : vector<8x128xf32>
    %c19 = arith.constant 19 : index
    %94 = memref.load %arg1[%c19] : memref<194xf32, #tpu.memory_space<smem>>
    %95 = vector.broadcast %94 : f32 to vector<8x128xf32>
    %96 = arith.mulf %9, %95 : vector<8x128xf32>
    %97 = arith.addf %84, %87 : vector<8x128xf32>
    %98 = arith.addf %90, %93 : vector<8x128xf32>
    %99 = arith.addf %97, %98 : vector<8x128xf32>
    %100 = arith.addf %99, %96 : vector<8x128xf32>
    %c53 = arith.constant 53 : index
    %101 = memref.load %arg1[%c53] : memref<194xf32, #tpu.memory_space<smem>>
    %102 = vector.broadcast %101 : f32 to vector<8x128xf32>
    %103 = arith.addf %100, %102 : vector<8x128xf32>
    %cst_17 = arith.constant 0.000000e+00 : f32
    %104 = vector.broadcast %cst_17 : f32 to vector<8x128xf32>
    %105 = arith.maximumf %103, %104 : vector<8x128xf32>
    %c20 = arith.constant 20 : index
    %106 = memref.load %arg1[%c20] : memref<194xf32, #tpu.memory_space<smem>>
    %107 = vector.broadcast %106 : f32 to vector<8x128xf32>
    %108 = arith.mulf %1, %107 : vector<8x128xf32>
    %c21 = arith.constant 21 : index
    %109 = memref.load %arg1[%c21] : memref<194xf32, #tpu.memory_space<smem>>
    %110 = vector.broadcast %109 : f32 to vector<8x128xf32>
    %111 = arith.mulf %3, %110 : vector<8x128xf32>
    %c22 = arith.constant 22 : index
    %112 = memref.load %arg1[%c22] : memref<194xf32, #tpu.memory_space<smem>>
    %113 = vector.broadcast %112 : f32 to vector<8x128xf32>
    %114 = arith.mulf %5, %113 : vector<8x128xf32>
    %c23 = arith.constant 23 : index
    %115 = memref.load %arg1[%c23] : memref<194xf32, #tpu.memory_space<smem>>
    %116 = vector.broadcast %115 : f32 to vector<8x128xf32>
    %117 = arith.mulf %7, %116 : vector<8x128xf32>
    %c24 = arith.constant 24 : index
    %118 = memref.load %arg1[%c24] : memref<194xf32, #tpu.memory_space<smem>>
    %119 = vector.broadcast %118 : f32 to vector<8x128xf32>
    %120 = arith.mulf %9, %119 : vector<8x128xf32>
    %121 = arith.addf %108, %111 : vector<8x128xf32>
    %122 = arith.addf %114, %117 : vector<8x128xf32>
    %123 = arith.addf %121, %122 : vector<8x128xf32>
    %124 = arith.addf %123, %120 : vector<8x128xf32>
    %c54 = arith.constant 54 : index
    %125 = memref.load %arg1[%c54] : memref<194xf32, #tpu.memory_space<smem>>
    %126 = vector.broadcast %125 : f32 to vector<8x128xf32>
    %127 = arith.addf %124, %126 : vector<8x128xf32>
    %cst_18 = arith.constant 0.000000e+00 : f32
    %128 = vector.broadcast %cst_18 : f32 to vector<8x128xf32>
    %129 = arith.maximumf %127, %128 : vector<8x128xf32>
    %c25 = arith.constant 25 : index
    %130 = memref.load %arg1[%c25] : memref<194xf32, #tpu.memory_space<smem>>
    %131 = vector.broadcast %130 : f32 to vector<8x128xf32>
    %132 = arith.mulf %1, %131 : vector<8x128xf32>
    %c26 = arith.constant 26 : index
    %133 = memref.load %arg1[%c26] : memref<194xf32, #tpu.memory_space<smem>>
    %134 = vector.broadcast %133 : f32 to vector<8x128xf32>
    %135 = arith.mulf %3, %134 : vector<8x128xf32>
    %c27 = arith.constant 27 : index
    %136 = memref.load %arg1[%c27] : memref<194xf32, #tpu.memory_space<smem>>
    %137 = vector.broadcast %136 : f32 to vector<8x128xf32>
    %138 = arith.mulf %5, %137 : vector<8x128xf32>
    %c28 = arith.constant 28 : index
    %139 = memref.load %arg1[%c28] : memref<194xf32, #tpu.memory_space<smem>>
    %140 = vector.broadcast %139 : f32 to vector<8x128xf32>
    %141 = arith.mulf %7, %140 : vector<8x128xf32>
    %c29 = arith.constant 29 : index
    %142 = memref.load %arg1[%c29] : memref<194xf32, #tpu.memory_space<smem>>
    %143 = vector.broadcast %142 : f32 to vector<8x128xf32>
    %144 = arith.mulf %9, %143 : vector<8x128xf32>
    %145 = arith.addf %132, %135 : vector<8x128xf32>
    %146 = arith.addf %138, %141 : vector<8x128xf32>
    %147 = arith.addf %145, %146 : vector<8x128xf32>
    %148 = arith.addf %147, %144 : vector<8x128xf32>
    %c55 = arith.constant 55 : index
    %149 = memref.load %arg1[%c55] : memref<194xf32, #tpu.memory_space<smem>>
    %150 = vector.broadcast %149 : f32 to vector<8x128xf32>
    %151 = arith.addf %148, %150 : vector<8x128xf32>
    %cst_19 = arith.constant 0.000000e+00 : f32
    %152 = vector.broadcast %cst_19 : f32 to vector<8x128xf32>
    %153 = arith.maximumf %151, %152 : vector<8x128xf32>
    %c30 = arith.constant 30 : index
    %154 = memref.load %arg1[%c30] : memref<194xf32, #tpu.memory_space<smem>>
    %155 = vector.broadcast %154 : f32 to vector<8x128xf32>
    %156 = arith.mulf %1, %155 : vector<8x128xf32>
    %c31 = arith.constant 31 : index
    %157 = memref.load %arg1[%c31] : memref<194xf32, #tpu.memory_space<smem>>
    %158 = vector.broadcast %157 : f32 to vector<8x128xf32>
    %159 = arith.mulf %3, %158 : vector<8x128xf32>
    %c32 = arith.constant 32 : index
    %160 = memref.load %arg1[%c32] : memref<194xf32, #tpu.memory_space<smem>>
    %161 = vector.broadcast %160 : f32 to vector<8x128xf32>
    %162 = arith.mulf %5, %161 : vector<8x128xf32>
    %c33 = arith.constant 33 : index
    %163 = memref.load %arg1[%c33] : memref<194xf32, #tpu.memory_space<smem>>
    %164 = vector.broadcast %163 : f32 to vector<8x128xf32>
    %165 = arith.mulf %7, %164 : vector<8x128xf32>
    %c34 = arith.constant 34 : index
    %166 = memref.load %arg1[%c34] : memref<194xf32, #tpu.memory_space<smem>>
    %167 = vector.broadcast %166 : f32 to vector<8x128xf32>
    %168 = arith.mulf %9, %167 : vector<8x128xf32>
    %169 = arith.addf %156, %159 : vector<8x128xf32>
    %170 = arith.addf %162, %165 : vector<8x128xf32>
    %171 = arith.addf %169, %170 : vector<8x128xf32>
    %172 = arith.addf %171, %168 : vector<8x128xf32>
    %c56 = arith.constant 56 : index
    %173 = memref.load %arg1[%c56] : memref<194xf32, #tpu.memory_space<smem>>
    %174 = vector.broadcast %173 : f32 to vector<8x128xf32>
    %175 = arith.addf %172, %174 : vector<8x128xf32>
    %cst_20 = arith.constant 0.000000e+00 : f32
    %176 = vector.broadcast %cst_20 : f32 to vector<8x128xf32>
    %177 = arith.maximumf %175, %176 : vector<8x128xf32>
    %c35 = arith.constant 35 : index
    %178 = memref.load %arg1[%c35] : memref<194xf32, #tpu.memory_space<smem>>
    %179 = vector.broadcast %178 : f32 to vector<8x128xf32>
    %180 = arith.mulf %1, %179 : vector<8x128xf32>
    %c36 = arith.constant 36 : index
    %181 = memref.load %arg1[%c36] : memref<194xf32, #tpu.memory_space<smem>>
    %182 = vector.broadcast %181 : f32 to vector<8x128xf32>
    %183 = arith.mulf %3, %182 : vector<8x128xf32>
    %c37 = arith.constant 37 : index
    %184 = memref.load %arg1[%c37] : memref<194xf32, #tpu.memory_space<smem>>
    %185 = vector.broadcast %184 : f32 to vector<8x128xf32>
    %186 = arith.mulf %5, %185 : vector<8x128xf32>
    %c38 = arith.constant 38 : index
    %187 = memref.load %arg1[%c38] : memref<194xf32, #tpu.memory_space<smem>>
    %188 = vector.broadcast %187 : f32 to vector<8x128xf32>
    %189 = arith.mulf %7, %188 : vector<8x128xf32>
    %c39 = arith.constant 39 : index
    %190 = memref.load %arg1[%c39] : memref<194xf32, #tpu.memory_space<smem>>
    %191 = vector.broadcast %190 : f32 to vector<8x128xf32>
    %192 = arith.mulf %9, %191 : vector<8x128xf32>
    %193 = arith.addf %180, %183 : vector<8x128xf32>
    %194 = arith.addf %186, %189 : vector<8x128xf32>
    %195 = arith.addf %193, %194 : vector<8x128xf32>
    %196 = arith.addf %195, %192 : vector<8x128xf32>
    %c57 = arith.constant 57 : index
    %197 = memref.load %arg1[%c57] : memref<194xf32, #tpu.memory_space<smem>>
    %198 = vector.broadcast %197 : f32 to vector<8x128xf32>
    %199 = arith.addf %196, %198 : vector<8x128xf32>
    %cst_21 = arith.constant 0.000000e+00 : f32
    %200 = vector.broadcast %cst_21 : f32 to vector<8x128xf32>
    %201 = arith.maximumf %199, %200 : vector<8x128xf32>
    %c40 = arith.constant 40 : index
    %202 = memref.load %arg1[%c40] : memref<194xf32, #tpu.memory_space<smem>>
    %203 = vector.broadcast %202 : f32 to vector<8x128xf32>
    %204 = arith.mulf %1, %203 : vector<8x128xf32>
    %c41 = arith.constant 41 : index
    %205 = memref.load %arg1[%c41] : memref<194xf32, #tpu.memory_space<smem>>
    %206 = vector.broadcast %205 : f32 to vector<8x128xf32>
    %207 = arith.mulf %3, %206 : vector<8x128xf32>
    %c42 = arith.constant 42 : index
    %208 = memref.load %arg1[%c42] : memref<194xf32, #tpu.memory_space<smem>>
    %209 = vector.broadcast %208 : f32 to vector<8x128xf32>
    %210 = arith.mulf %5, %209 : vector<8x128xf32>
    %c43 = arith.constant 43 : index
    %211 = memref.load %arg1[%c43] : memref<194xf32, #tpu.memory_space<smem>>
    %212 = vector.broadcast %211 : f32 to vector<8x128xf32>
    %213 = arith.mulf %7, %212 : vector<8x128xf32>
    %c44 = arith.constant 44 : index
    %214 = memref.load %arg1[%c44] : memref<194xf32, #tpu.memory_space<smem>>
    %215 = vector.broadcast %214 : f32 to vector<8x128xf32>
    %216 = arith.mulf %9, %215 : vector<8x128xf32>
    %217 = arith.addf %204, %207 : vector<8x128xf32>
    %218 = arith.addf %210, %213 : vector<8x128xf32>
    %219 = arith.addf %217, %218 : vector<8x128xf32>
    %220 = arith.addf %219, %216 : vector<8x128xf32>
    %c58 = arith.constant 58 : index
    %221 = memref.load %arg1[%c58] : memref<194xf32, #tpu.memory_space<smem>>
    %222 = vector.broadcast %221 : f32 to vector<8x128xf32>
    %223 = arith.addf %220, %222 : vector<8x128xf32>
    %cst_22 = arith.constant 0.000000e+00 : f32
    %224 = vector.broadcast %cst_22 : f32 to vector<8x128xf32>
    %225 = arith.maximumf %223, %224 : vector<8x128xf32>
    %c45 = arith.constant 45 : index
    %226 = memref.load %arg1[%c45] : memref<194xf32, #tpu.memory_space<smem>>
    %227 = vector.broadcast %226 : f32 to vector<8x128xf32>
    %228 = arith.mulf %1, %227 : vector<8x128xf32>
    %c46 = arith.constant 46 : index
    %229 = memref.load %arg1[%c46] : memref<194xf32, #tpu.memory_space<smem>>
    %230 = vector.broadcast %229 : f32 to vector<8x128xf32>
    %231 = arith.mulf %3, %230 : vector<8x128xf32>
    %c47 = arith.constant 47 : index
    %232 = memref.load %arg1[%c47] : memref<194xf32, #tpu.memory_space<smem>>
    %233 = vector.broadcast %232 : f32 to vector<8x128xf32>
    %234 = arith.mulf %5, %233 : vector<8x128xf32>
    %c48 = arith.constant 48 : index
    %235 = memref.load %arg1[%c48] : memref<194xf32, #tpu.memory_space<smem>>
    %236 = vector.broadcast %235 : f32 to vector<8x128xf32>
    %237 = arith.mulf %7, %236 : vector<8x128xf32>
    %c49 = arith.constant 49 : index
    %238 = memref.load %arg1[%c49] : memref<194xf32, #tpu.memory_space<smem>>
    %239 = vector.broadcast %238 : f32 to vector<8x128xf32>
    %240 = arith.mulf %9, %239 : vector<8x128xf32>
    %241 = arith.addf %228, %231 : vector<8x128xf32>
    %242 = arith.addf %234, %237 : vector<8x128xf32>
    %243 = arith.addf %241, %242 : vector<8x128xf32>
    %244 = arith.addf %243, %240 : vector<8x128xf32>
    %c59 = arith.constant 59 : index
    %245 = memref.load %arg1[%c59] : memref<194xf32, #tpu.memory_space<smem>>
    %246 = vector.broadcast %245 : f32 to vector<8x128xf32>
    %247 = arith.addf %244, %246 : vector<8x128xf32>
    %cst_23 = arith.constant 0.000000e+00 : f32
    %248 = vector.broadcast %cst_23 : f32 to vector<8x128xf32>
    %249 = arith.maximumf %247, %248 : vector<8x128xf32>
    %c60 = arith.constant 60 : index
    %250 = memref.load %arg1[%c60] : memref<194xf32, #tpu.memory_space<smem>>
    %251 = vector.broadcast %250 : f32 to vector<8x128xf32>
    %252 = arith.mulf %33, %251 : vector<8x128xf32>
    %c61 = arith.constant 61 : index
    %253 = memref.load %arg1[%c61] : memref<194xf32, #tpu.memory_space<smem>>
    %254 = vector.broadcast %253 : f32 to vector<8x128xf32>
    %255 = arith.mulf %57, %254 : vector<8x128xf32>
    %c62 = arith.constant 62 : index
    %256 = memref.load %arg1[%c62] : memref<194xf32, #tpu.memory_space<smem>>
    %257 = vector.broadcast %256 : f32 to vector<8x128xf32>
    %258 = arith.mulf %81, %257 : vector<8x128xf32>
    %c63 = arith.constant 63 : index
    %259 = memref.load %arg1[%c63] : memref<194xf32, #tpu.memory_space<smem>>
    %260 = vector.broadcast %259 : f32 to vector<8x128xf32>
    %261 = arith.mulf %105, %260 : vector<8x128xf32>
    %c64 = arith.constant 64 : index
    %262 = memref.load %arg1[%c64] : memref<194xf32, #tpu.memory_space<smem>>
    %263 = vector.broadcast %262 : f32 to vector<8x128xf32>
    %264 = arith.mulf %129, %263 : vector<8x128xf32>
    %c65 = arith.constant 65 : index
    %265 = memref.load %arg1[%c65] : memref<194xf32, #tpu.memory_space<smem>>
    %266 = vector.broadcast %265 : f32 to vector<8x128xf32>
    %267 = arith.mulf %153, %266 : vector<8x128xf32>
    %c66 = arith.constant 66 : index
    %268 = memref.load %arg1[%c66] : memref<194xf32, #tpu.memory_space<smem>>
    %269 = vector.broadcast %268 : f32 to vector<8x128xf32>
    %270 = arith.mulf %177, %269 : vector<8x128xf32>
    %c67 = arith.constant 67 : index
    %271 = memref.load %arg1[%c67] : memref<194xf32, #tpu.memory_space<smem>>
    %272 = vector.broadcast %271 : f32 to vector<8x128xf32>
    %273 = arith.mulf %201, %272 : vector<8x128xf32>
    %c68 = arith.constant 68 : index
    %274 = memref.load %arg1[%c68] : memref<194xf32, #tpu.memory_space<smem>>
    %275 = vector.broadcast %274 : f32 to vector<8x128xf32>
    %276 = arith.mulf %225, %275 : vector<8x128xf32>
    %c69 = arith.constant 69 : index
    %277 = memref.load %arg1[%c69] : memref<194xf32, #tpu.memory_space<smem>>
    %278 = vector.broadcast %277 : f32 to vector<8x128xf32>
    %279 = arith.mulf %249, %278 : vector<8x128xf32>
    %280 = arith.addf %252, %255 : vector<8x128xf32>
    %281 = arith.addf %258, %261 : vector<8x128xf32>
    %282 = arith.addf %264, %267 : vector<8x128xf32>
    %283 = arith.addf %270, %273 : vector<8x128xf32>
    %284 = arith.addf %276, %279 : vector<8x128xf32>
    %285 = arith.addf %280, %281 : vector<8x128xf32>
    %286 = arith.addf %282, %283 : vector<8x128xf32>
    %287 = arith.addf %285, %286 : vector<8x128xf32>
    %288 = arith.addf %287, %284 : vector<8x128xf32>
    %c160 = arith.constant 160 : index
    %289 = memref.load %arg1[%c160] : memref<194xf32, #tpu.memory_space<smem>>
    %290 = vector.broadcast %289 : f32 to vector<8x128xf32>
    %291 = arith.addf %288, %290 : vector<8x128xf32>
    %cst_24 = arith.constant 0.000000e+00 : f32
    %292 = vector.broadcast %cst_24 : f32 to vector<8x128xf32>
    %293 = arith.maximumf %291, %292 : vector<8x128xf32>
    %c70 = arith.constant 70 : index
    %294 = memref.load %arg1[%c70] : memref<194xf32, #tpu.memory_space<smem>>
    %295 = vector.broadcast %294 : f32 to vector<8x128xf32>
    %296 = arith.mulf %33, %295 : vector<8x128xf32>
    %c71 = arith.constant 71 : index
    %297 = memref.load %arg1[%c71] : memref<194xf32, #tpu.memory_space<smem>>
    %298 = vector.broadcast %297 : f32 to vector<8x128xf32>
    %299 = arith.mulf %57, %298 : vector<8x128xf32>
    %c72 = arith.constant 72 : index
    %300 = memref.load %arg1[%c72] : memref<194xf32, #tpu.memory_space<smem>>
    %301 = vector.broadcast %300 : f32 to vector<8x128xf32>
    %302 = arith.mulf %81, %301 : vector<8x128xf32>
    %c73 = arith.constant 73 : index
    %303 = memref.load %arg1[%c73] : memref<194xf32, #tpu.memory_space<smem>>
    %304 = vector.broadcast %303 : f32 to vector<8x128xf32>
    %305 = arith.mulf %105, %304 : vector<8x128xf32>
    %c74 = arith.constant 74 : index
    %306 = memref.load %arg1[%c74] : memref<194xf32, #tpu.memory_space<smem>>
    %307 = vector.broadcast %306 : f32 to vector<8x128xf32>
    %308 = arith.mulf %129, %307 : vector<8x128xf32>
    %c75 = arith.constant 75 : index
    %309 = memref.load %arg1[%c75] : memref<194xf32, #tpu.memory_space<smem>>
    %310 = vector.broadcast %309 : f32 to vector<8x128xf32>
    %311 = arith.mulf %153, %310 : vector<8x128xf32>
    %c76 = arith.constant 76 : index
    %312 = memref.load %arg1[%c76] : memref<194xf32, #tpu.memory_space<smem>>
    %313 = vector.broadcast %312 : f32 to vector<8x128xf32>
    %314 = arith.mulf %177, %313 : vector<8x128xf32>
    %c77 = arith.constant 77 : index
    %315 = memref.load %arg1[%c77] : memref<194xf32, #tpu.memory_space<smem>>
    %316 = vector.broadcast %315 : f32 to vector<8x128xf32>
    %317 = arith.mulf %201, %316 : vector<8x128xf32>
    %c78 = arith.constant 78 : index
    %318 = memref.load %arg1[%c78] : memref<194xf32, #tpu.memory_space<smem>>
    %319 = vector.broadcast %318 : f32 to vector<8x128xf32>
    %320 = arith.mulf %225, %319 : vector<8x128xf32>
    %c79 = arith.constant 79 : index
    %321 = memref.load %arg1[%c79] : memref<194xf32, #tpu.memory_space<smem>>
    %322 = vector.broadcast %321 : f32 to vector<8x128xf32>
    %323 = arith.mulf %249, %322 : vector<8x128xf32>
    %324 = arith.addf %296, %299 : vector<8x128xf32>
    %325 = arith.addf %302, %305 : vector<8x128xf32>
    %326 = arith.addf %308, %311 : vector<8x128xf32>
    %327 = arith.addf %314, %317 : vector<8x128xf32>
    %328 = arith.addf %320, %323 : vector<8x128xf32>
    %329 = arith.addf %324, %325 : vector<8x128xf32>
    %330 = arith.addf %326, %327 : vector<8x128xf32>
    %331 = arith.addf %329, %330 : vector<8x128xf32>
    %332 = arith.addf %331, %328 : vector<8x128xf32>
    %c161 = arith.constant 161 : index
    %333 = memref.load %arg1[%c161] : memref<194xf32, #tpu.memory_space<smem>>
    %334 = vector.broadcast %333 : f32 to vector<8x128xf32>
    %335 = arith.addf %332, %334 : vector<8x128xf32>
    %cst_25 = arith.constant 0.000000e+00 : f32
    %336 = vector.broadcast %cst_25 : f32 to vector<8x128xf32>
    %337 = arith.maximumf %335, %336 : vector<8x128xf32>
    %c80 = arith.constant 80 : index
    %338 = memref.load %arg1[%c80] : memref<194xf32, #tpu.memory_space<smem>>
    %339 = vector.broadcast %338 : f32 to vector<8x128xf32>
    %340 = arith.mulf %33, %339 : vector<8x128xf32>
    %c81 = arith.constant 81 : index
    %341 = memref.load %arg1[%c81] : memref<194xf32, #tpu.memory_space<smem>>
    %342 = vector.broadcast %341 : f32 to vector<8x128xf32>
    %343 = arith.mulf %57, %342 : vector<8x128xf32>
    %c82 = arith.constant 82 : index
    %344 = memref.load %arg1[%c82] : memref<194xf32, #tpu.memory_space<smem>>
    %345 = vector.broadcast %344 : f32 to vector<8x128xf32>
    %346 = arith.mulf %81, %345 : vector<8x128xf32>
    %c83 = arith.constant 83 : index
    %347 = memref.load %arg1[%c83] : memref<194xf32, #tpu.memory_space<smem>>
    %348 = vector.broadcast %347 : f32 to vector<8x128xf32>
    %349 = arith.mulf %105, %348 : vector<8x128xf32>
    %c84 = arith.constant 84 : index
    %350 = memref.load %arg1[%c84] : memref<194xf32, #tpu.memory_space<smem>>
    %351 = vector.broadcast %350 : f32 to vector<8x128xf32>
    %352 = arith.mulf %129, %351 : vector<8x128xf32>
    %c85 = arith.constant 85 : index
    %353 = memref.load %arg1[%c85] : memref<194xf32, #tpu.memory_space<smem>>
    %354 = vector.broadcast %353 : f32 to vector<8x128xf32>
    %355 = arith.mulf %153, %354 : vector<8x128xf32>
    %c86 = arith.constant 86 : index
    %356 = memref.load %arg1[%c86] : memref<194xf32, #tpu.memory_space<smem>>
    %357 = vector.broadcast %356 : f32 to vector<8x128xf32>
    %358 = arith.mulf %177, %357 : vector<8x128xf32>
    %c87 = arith.constant 87 : index
    %359 = memref.load %arg1[%c87] : memref<194xf32, #tpu.memory_space<smem>>
    %360 = vector.broadcast %359 : f32 to vector<8x128xf32>
    %361 = arith.mulf %201, %360 : vector<8x128xf32>
    %c88 = arith.constant 88 : index
    %362 = memref.load %arg1[%c88] : memref<194xf32, #tpu.memory_space<smem>>
    %363 = vector.broadcast %362 : f32 to vector<8x128xf32>
    %364 = arith.mulf %225, %363 : vector<8x128xf32>
    %c89 = arith.constant 89 : index
    %365 = memref.load %arg1[%c89] : memref<194xf32, #tpu.memory_space<smem>>
    %366 = vector.broadcast %365 : f32 to vector<8x128xf32>
    %367 = arith.mulf %249, %366 : vector<8x128xf32>
    %368 = arith.addf %340, %343 : vector<8x128xf32>
    %369 = arith.addf %346, %349 : vector<8x128xf32>
    %370 = arith.addf %352, %355 : vector<8x128xf32>
    %371 = arith.addf %358, %361 : vector<8x128xf32>
    %372 = arith.addf %364, %367 : vector<8x128xf32>
    %373 = arith.addf %368, %369 : vector<8x128xf32>
    %374 = arith.addf %370, %371 : vector<8x128xf32>
    %375 = arith.addf %373, %374 : vector<8x128xf32>
    %376 = arith.addf %375, %372 : vector<8x128xf32>
    %c162 = arith.constant 162 : index
    %377 = memref.load %arg1[%c162] : memref<194xf32, #tpu.memory_space<smem>>
    %378 = vector.broadcast %377 : f32 to vector<8x128xf32>
    %379 = arith.addf %376, %378 : vector<8x128xf32>
    %cst_26 = arith.constant 0.000000e+00 : f32
    %380 = vector.broadcast %cst_26 : f32 to vector<8x128xf32>
    %381 = arith.maximumf %379, %380 : vector<8x128xf32>
    %c90 = arith.constant 90 : index
    %382 = memref.load %arg1[%c90] : memref<194xf32, #tpu.memory_space<smem>>
    %383 = vector.broadcast %382 : f32 to vector<8x128xf32>
    %384 = arith.mulf %33, %383 : vector<8x128xf32>
    %c91 = arith.constant 91 : index
    %385 = memref.load %arg1[%c91] : memref<194xf32, #tpu.memory_space<smem>>
    %386 = vector.broadcast %385 : f32 to vector<8x128xf32>
    %387 = arith.mulf %57, %386 : vector<8x128xf32>
    %c92 = arith.constant 92 : index
    %388 = memref.load %arg1[%c92] : memref<194xf32, #tpu.memory_space<smem>>
    %389 = vector.broadcast %388 : f32 to vector<8x128xf32>
    %390 = arith.mulf %81, %389 : vector<8x128xf32>
    %c93 = arith.constant 93 : index
    %391 = memref.load %arg1[%c93] : memref<194xf32, #tpu.memory_space<smem>>
    %392 = vector.broadcast %391 : f32 to vector<8x128xf32>
    %393 = arith.mulf %105, %392 : vector<8x128xf32>
    %c94 = arith.constant 94 : index
    %394 = memref.load %arg1[%c94] : memref<194xf32, #tpu.memory_space<smem>>
    %395 = vector.broadcast %394 : f32 to vector<8x128xf32>
    %396 = arith.mulf %129, %395 : vector<8x128xf32>
    %c95 = arith.constant 95 : index
    %397 = memref.load %arg1[%c95] : memref<194xf32, #tpu.memory_space<smem>>
    %398 = vector.broadcast %397 : f32 to vector<8x128xf32>
    %399 = arith.mulf %153, %398 : vector<8x128xf32>
    %c96 = arith.constant 96 : index
    %400 = memref.load %arg1[%c96] : memref<194xf32, #tpu.memory_space<smem>>
    %401 = vector.broadcast %400 : f32 to vector<8x128xf32>
    %402 = arith.mulf %177, %401 : vector<8x128xf32>
    %c97 = arith.constant 97 : index
    %403 = memref.load %arg1[%c97] : memref<194xf32, #tpu.memory_space<smem>>
    %404 = vector.broadcast %403 : f32 to vector<8x128xf32>
    %405 = arith.mulf %201, %404 : vector<8x128xf32>
    %c98 = arith.constant 98 : index
    %406 = memref.load %arg1[%c98] : memref<194xf32, #tpu.memory_space<smem>>
    %407 = vector.broadcast %406 : f32 to vector<8x128xf32>
    %408 = arith.mulf %225, %407 : vector<8x128xf32>
    %c99 = arith.constant 99 : index
    %409 = memref.load %arg1[%c99] : memref<194xf32, #tpu.memory_space<smem>>
    %410 = vector.broadcast %409 : f32 to vector<8x128xf32>
    %411 = arith.mulf %249, %410 : vector<8x128xf32>
    %412 = arith.addf %384, %387 : vector<8x128xf32>
    %413 = arith.addf %390, %393 : vector<8x128xf32>
    %414 = arith.addf %396, %399 : vector<8x128xf32>
    %415 = arith.addf %402, %405 : vector<8x128xf32>
    %416 = arith.addf %408, %411 : vector<8x128xf32>
    %417 = arith.addf %412, %413 : vector<8x128xf32>
    %418 = arith.addf %414, %415 : vector<8x128xf32>
    %419 = arith.addf %417, %418 : vector<8x128xf32>
    %420 = arith.addf %419, %416 : vector<8x128xf32>
    %c163 = arith.constant 163 : index
    %421 = memref.load %arg1[%c163] : memref<194xf32, #tpu.memory_space<smem>>
    %422 = vector.broadcast %421 : f32 to vector<8x128xf32>
    %423 = arith.addf %420, %422 : vector<8x128xf32>
    %cst_27 = arith.constant 0.000000e+00 : f32
    %424 = vector.broadcast %cst_27 : f32 to vector<8x128xf32>
    %425 = arith.maximumf %423, %424 : vector<8x128xf32>
    %c100 = arith.constant 100 : index
    %426 = memref.load %arg1[%c100] : memref<194xf32, #tpu.memory_space<smem>>
    %427 = vector.broadcast %426 : f32 to vector<8x128xf32>
    %428 = arith.mulf %33, %427 : vector<8x128xf32>
    %c101 = arith.constant 101 : index
    %429 = memref.load %arg1[%c101] : memref<194xf32, #tpu.memory_space<smem>>
    %430 = vector.broadcast %429 : f32 to vector<8x128xf32>
    %431 = arith.mulf %57, %430 : vector<8x128xf32>
    %c102 = arith.constant 102 : index
    %432 = memref.load %arg1[%c102] : memref<194xf32, #tpu.memory_space<smem>>
    %433 = vector.broadcast %432 : f32 to vector<8x128xf32>
    %434 = arith.mulf %81, %433 : vector<8x128xf32>
    %c103 = arith.constant 103 : index
    %435 = memref.load %arg1[%c103] : memref<194xf32, #tpu.memory_space<smem>>
    %436 = vector.broadcast %435 : f32 to vector<8x128xf32>
    %437 = arith.mulf %105, %436 : vector<8x128xf32>
    %c104 = arith.constant 104 : index
    %438 = memref.load %arg1[%c104] : memref<194xf32, #tpu.memory_space<smem>>
    %439 = vector.broadcast %438 : f32 to vector<8x128xf32>
    %440 = arith.mulf %129, %439 : vector<8x128xf32>
    %c105 = arith.constant 105 : index
    %441 = memref.load %arg1[%c105] : memref<194xf32, #tpu.memory_space<smem>>
    %442 = vector.broadcast %441 : f32 to vector<8x128xf32>
    %443 = arith.mulf %153, %442 : vector<8x128xf32>
    %c106 = arith.constant 106 : index
    %444 = memref.load %arg1[%c106] : memref<194xf32, #tpu.memory_space<smem>>
    %445 = vector.broadcast %444 : f32 to vector<8x128xf32>
    %446 = arith.mulf %177, %445 : vector<8x128xf32>
    %c107 = arith.constant 107 : index
    %447 = memref.load %arg1[%c107] : memref<194xf32, #tpu.memory_space<smem>>
    %448 = vector.broadcast %447 : f32 to vector<8x128xf32>
    %449 = arith.mulf %201, %448 : vector<8x128xf32>
    %c108 = arith.constant 108 : index
    %450 = memref.load %arg1[%c108] : memref<194xf32, #tpu.memory_space<smem>>
    %451 = vector.broadcast %450 : f32 to vector<8x128xf32>
    %452 = arith.mulf %225, %451 : vector<8x128xf32>
    %c109 = arith.constant 109 : index
    %453 = memref.load %arg1[%c109] : memref<194xf32, #tpu.memory_space<smem>>
    %454 = vector.broadcast %453 : f32 to vector<8x128xf32>
    %455 = arith.mulf %249, %454 : vector<8x128xf32>
    %456 = arith.addf %428, %431 : vector<8x128xf32>
    %457 = arith.addf %434, %437 : vector<8x128xf32>
    %458 = arith.addf %440, %443 : vector<8x128xf32>
    %459 = arith.addf %446, %449 : vector<8x128xf32>
    %460 = arith.addf %452, %455 : vector<8x128xf32>
    %461 = arith.addf %456, %457 : vector<8x128xf32>
    %462 = arith.addf %458, %459 : vector<8x128xf32>
    %463 = arith.addf %461, %462 : vector<8x128xf32>
    %464 = arith.addf %463, %460 : vector<8x128xf32>
    %c164 = arith.constant 164 : index
    %465 = memref.load %arg1[%c164] : memref<194xf32, #tpu.memory_space<smem>>
    %466 = vector.broadcast %465 : f32 to vector<8x128xf32>
    %467 = arith.addf %464, %466 : vector<8x128xf32>
    %cst_28 = arith.constant 0.000000e+00 : f32
    %468 = vector.broadcast %cst_28 : f32 to vector<8x128xf32>
    %469 = arith.maximumf %467, %468 : vector<8x128xf32>
    %c110 = arith.constant 110 : index
    %470 = memref.load %arg1[%c110] : memref<194xf32, #tpu.memory_space<smem>>
    %471 = vector.broadcast %470 : f32 to vector<8x128xf32>
    %472 = arith.mulf %33, %471 : vector<8x128xf32>
    %c111 = arith.constant 111 : index
    %473 = memref.load %arg1[%c111] : memref<194xf32, #tpu.memory_space<smem>>
    %474 = vector.broadcast %473 : f32 to vector<8x128xf32>
    %475 = arith.mulf %57, %474 : vector<8x128xf32>
    %c112 = arith.constant 112 : index
    %476 = memref.load %arg1[%c112] : memref<194xf32, #tpu.memory_space<smem>>
    %477 = vector.broadcast %476 : f32 to vector<8x128xf32>
    %478 = arith.mulf %81, %477 : vector<8x128xf32>
    %c113 = arith.constant 113 : index
    %479 = memref.load %arg1[%c113] : memref<194xf32, #tpu.memory_space<smem>>
    %480 = vector.broadcast %479 : f32 to vector<8x128xf32>
    %481 = arith.mulf %105, %480 : vector<8x128xf32>
    %c114 = arith.constant 114 : index
    %482 = memref.load %arg1[%c114] : memref<194xf32, #tpu.memory_space<smem>>
    %483 = vector.broadcast %482 : f32 to vector<8x128xf32>
    %484 = arith.mulf %129, %483 : vector<8x128xf32>
    %c115 = arith.constant 115 : index
    %485 = memref.load %arg1[%c115] : memref<194xf32, #tpu.memory_space<smem>>
    %486 = vector.broadcast %485 : f32 to vector<8x128xf32>
    %487 = arith.mulf %153, %486 : vector<8x128xf32>
    %c116 = arith.constant 116 : index
    %488 = memref.load %arg1[%c116] : memref<194xf32, #tpu.memory_space<smem>>
    %489 = vector.broadcast %488 : f32 to vector<8x128xf32>
    %490 = arith.mulf %177, %489 : vector<8x128xf32>
    %c117 = arith.constant 117 : index
    %491 = memref.load %arg1[%c117] : memref<194xf32, #tpu.memory_space<smem>>
    %492 = vector.broadcast %491 : f32 to vector<8x128xf32>
    %493 = arith.mulf %201, %492 : vector<8x128xf32>
    %c118 = arith.constant 118 : index
    %494 = memref.load %arg1[%c118] : memref<194xf32, #tpu.memory_space<smem>>
    %495 = vector.broadcast %494 : f32 to vector<8x128xf32>
    %496 = arith.mulf %225, %495 : vector<8x128xf32>
    %c119 = arith.constant 119 : index
    %497 = memref.load %arg1[%c119] : memref<194xf32, #tpu.memory_space<smem>>
    %498 = vector.broadcast %497 : f32 to vector<8x128xf32>
    %499 = arith.mulf %249, %498 : vector<8x128xf32>
    %500 = arith.addf %472, %475 : vector<8x128xf32>
    %501 = arith.addf %478, %481 : vector<8x128xf32>
    %502 = arith.addf %484, %487 : vector<8x128xf32>
    %503 = arith.addf %490, %493 : vector<8x128xf32>
    %504 = arith.addf %496, %499 : vector<8x128xf32>
    %505 = arith.addf %500, %501 : vector<8x128xf32>
    %506 = arith.addf %502, %503 : vector<8x128xf32>
    %507 = arith.addf %505, %506 : vector<8x128xf32>
    %508 = arith.addf %507, %504 : vector<8x128xf32>
    %c165 = arith.constant 165 : index
    %509 = memref.load %arg1[%c165] : memref<194xf32, #tpu.memory_space<smem>>
    %510 = vector.broadcast %509 : f32 to vector<8x128xf32>
    %511 = arith.addf %508, %510 : vector<8x128xf32>
    %cst_29 = arith.constant 0.000000e+00 : f32
    %512 = vector.broadcast %cst_29 : f32 to vector<8x128xf32>
    %513 = arith.maximumf %511, %512 : vector<8x128xf32>
    %c120 = arith.constant 120 : index
    %514 = memref.load %arg1[%c120] : memref<194xf32, #tpu.memory_space<smem>>
    %515 = vector.broadcast %514 : f32 to vector<8x128xf32>
    %516 = arith.mulf %33, %515 : vector<8x128xf32>
    %c121 = arith.constant 121 : index
    %517 = memref.load %arg1[%c121] : memref<194xf32, #tpu.memory_space<smem>>
    %518 = vector.broadcast %517 : f32 to vector<8x128xf32>
    %519 = arith.mulf %57, %518 : vector<8x128xf32>
    %c122 = arith.constant 122 : index
    %520 = memref.load %arg1[%c122] : memref<194xf32, #tpu.memory_space<smem>>
    %521 = vector.broadcast %520 : f32 to vector<8x128xf32>
    %522 = arith.mulf %81, %521 : vector<8x128xf32>
    %c123 = arith.constant 123 : index
    %523 = memref.load %arg1[%c123] : memref<194xf32, #tpu.memory_space<smem>>
    %524 = vector.broadcast %523 : f32 to vector<8x128xf32>
    %525 = arith.mulf %105, %524 : vector<8x128xf32>
    %c124 = arith.constant 124 : index
    %526 = memref.load %arg1[%c124] : memref<194xf32, #tpu.memory_space<smem>>
    %527 = vector.broadcast %526 : f32 to vector<8x128xf32>
    %528 = arith.mulf %129, %527 : vector<8x128xf32>
    %c125 = arith.constant 125 : index
    %529 = memref.load %arg1[%c125] : memref<194xf32, #tpu.memory_space<smem>>
    %530 = vector.broadcast %529 : f32 to vector<8x128xf32>
    %531 = arith.mulf %153, %530 : vector<8x128xf32>
    %c126 = arith.constant 126 : index
    %532 = memref.load %arg1[%c126] : memref<194xf32, #tpu.memory_space<smem>>
    %533 = vector.broadcast %532 : f32 to vector<8x128xf32>
    %534 = arith.mulf %177, %533 : vector<8x128xf32>
    %c127 = arith.constant 127 : index
    %535 = memref.load %arg1[%c127] : memref<194xf32, #tpu.memory_space<smem>>
    %536 = vector.broadcast %535 : f32 to vector<8x128xf32>
    %537 = arith.mulf %201, %536 : vector<8x128xf32>
    %c128 = arith.constant 128 : index
    %538 = memref.load %arg1[%c128] : memref<194xf32, #tpu.memory_space<smem>>
    %539 = vector.broadcast %538 : f32 to vector<8x128xf32>
    %540 = arith.mulf %225, %539 : vector<8x128xf32>
    %c129 = arith.constant 129 : index
    %541 = memref.load %arg1[%c129] : memref<194xf32, #tpu.memory_space<smem>>
    %542 = vector.broadcast %541 : f32 to vector<8x128xf32>
    %543 = arith.mulf %249, %542 : vector<8x128xf32>
    %544 = arith.addf %516, %519 : vector<8x128xf32>
    %545 = arith.addf %522, %525 : vector<8x128xf32>
    %546 = arith.addf %528, %531 : vector<8x128xf32>
    %547 = arith.addf %534, %537 : vector<8x128xf32>
    %548 = arith.addf %540, %543 : vector<8x128xf32>
    %549 = arith.addf %544, %545 : vector<8x128xf32>
    %550 = arith.addf %546, %547 : vector<8x128xf32>
    %551 = arith.addf %549, %550 : vector<8x128xf32>
    %552 = arith.addf %551, %548 : vector<8x128xf32>
    %c166 = arith.constant 166 : index
    %553 = memref.load %arg1[%c166] : memref<194xf32, #tpu.memory_space<smem>>
    %554 = vector.broadcast %553 : f32 to vector<8x128xf32>
    %555 = arith.addf %552, %554 : vector<8x128xf32>
    %cst_30 = arith.constant 0.000000e+00 : f32
    %556 = vector.broadcast %cst_30 : f32 to vector<8x128xf32>
    %557 = arith.maximumf %555, %556 : vector<8x128xf32>
    %c130 = arith.constant 130 : index
    %558 = memref.load %arg1[%c130] : memref<194xf32, #tpu.memory_space<smem>>
    %559 = vector.broadcast %558 : f32 to vector<8x128xf32>
    %560 = arith.mulf %33, %559 : vector<8x128xf32>
    %c131 = arith.constant 131 : index
    %561 = memref.load %arg1[%c131] : memref<194xf32, #tpu.memory_space<smem>>
    %562 = vector.broadcast %561 : f32 to vector<8x128xf32>
    %563 = arith.mulf %57, %562 : vector<8x128xf32>
    %c132 = arith.constant 132 : index
    %564 = memref.load %arg1[%c132] : memref<194xf32, #tpu.memory_space<smem>>
    %565 = vector.broadcast %564 : f32 to vector<8x128xf32>
    %566 = arith.mulf %81, %565 : vector<8x128xf32>
    %c133 = arith.constant 133 : index
    %567 = memref.load %arg1[%c133] : memref<194xf32, #tpu.memory_space<smem>>
    %568 = vector.broadcast %567 : f32 to vector<8x128xf32>
    %569 = arith.mulf %105, %568 : vector<8x128xf32>
    %c134 = arith.constant 134 : index
    %570 = memref.load %arg1[%c134] : memref<194xf32, #tpu.memory_space<smem>>
    %571 = vector.broadcast %570 : f32 to vector<8x128xf32>
    %572 = arith.mulf %129, %571 : vector<8x128xf32>
    %c135 = arith.constant 135 : index
    %573 = memref.load %arg1[%c135] : memref<194xf32, #tpu.memory_space<smem>>
    %574 = vector.broadcast %573 : f32 to vector<8x128xf32>
    %575 = arith.mulf %153, %574 : vector<8x128xf32>
    %c136 = arith.constant 136 : index
    %576 = memref.load %arg1[%c136] : memref<194xf32, #tpu.memory_space<smem>>
    %577 = vector.broadcast %576 : f32 to vector<8x128xf32>
    %578 = arith.mulf %177, %577 : vector<8x128xf32>
    %c137 = arith.constant 137 : index
    %579 = memref.load %arg1[%c137] : memref<194xf32, #tpu.memory_space<smem>>
    %580 = vector.broadcast %579 : f32 to vector<8x128xf32>
    %581 = arith.mulf %201, %580 : vector<8x128xf32>
    %c138 = arith.constant 138 : index
    %582 = memref.load %arg1[%c138] : memref<194xf32, #tpu.memory_space<smem>>
    %583 = vector.broadcast %582 : f32 to vector<8x128xf32>
    %584 = arith.mulf %225, %583 : vector<8x128xf32>
    %c139 = arith.constant 139 : index
    %585 = memref.load %arg1[%c139] : memref<194xf32, #tpu.memory_space<smem>>
    %586 = vector.broadcast %585 : f32 to vector<8x128xf32>
    %587 = arith.mulf %249, %586 : vector<8x128xf32>
    %588 = arith.addf %560, %563 : vector<8x128xf32>
    %589 = arith.addf %566, %569 : vector<8x128xf32>
    %590 = arith.addf %572, %575 : vector<8x128xf32>
    %591 = arith.addf %578, %581 : vector<8x128xf32>
    %592 = arith.addf %584, %587 : vector<8x128xf32>
    %593 = arith.addf %588, %589 : vector<8x128xf32>
    %594 = arith.addf %590, %591 : vector<8x128xf32>
    %595 = arith.addf %593, %594 : vector<8x128xf32>
    %596 = arith.addf %595, %592 : vector<8x128xf32>
    %c167 = arith.constant 167 : index
    %597 = memref.load %arg1[%c167] : memref<194xf32, #tpu.memory_space<smem>>
    %598 = vector.broadcast %597 : f32 to vector<8x128xf32>
    %599 = arith.addf %596, %598 : vector<8x128xf32>
    %cst_31 = arith.constant 0.000000e+00 : f32
    %600 = vector.broadcast %cst_31 : f32 to vector<8x128xf32>
    %601 = arith.maximumf %599, %600 : vector<8x128xf32>
    %c140 = arith.constant 140 : index
    %602 = memref.load %arg1[%c140] : memref<194xf32, #tpu.memory_space<smem>>
    %603 = vector.broadcast %602 : f32 to vector<8x128xf32>
    %604 = arith.mulf %33, %603 : vector<8x128xf32>
    %c141 = arith.constant 141 : index
    %605 = memref.load %arg1[%c141] : memref<194xf32, #tpu.memory_space<smem>>
    %606 = vector.broadcast %605 : f32 to vector<8x128xf32>
    %607 = arith.mulf %57, %606 : vector<8x128xf32>
    %c142 = arith.constant 142 : index
    %608 = memref.load %arg1[%c142] : memref<194xf32, #tpu.memory_space<smem>>
    %609 = vector.broadcast %608 : f32 to vector<8x128xf32>
    %610 = arith.mulf %81, %609 : vector<8x128xf32>
    %c143 = arith.constant 143 : index
    %611 = memref.load %arg1[%c143] : memref<194xf32, #tpu.memory_space<smem>>
    %612 = vector.broadcast %611 : f32 to vector<8x128xf32>
    %613 = arith.mulf %105, %612 : vector<8x128xf32>
    %c144 = arith.constant 144 : index
    %614 = memref.load %arg1[%c144] : memref<194xf32, #tpu.memory_space<smem>>
    %615 = vector.broadcast %614 : f32 to vector<8x128xf32>
    %616 = arith.mulf %129, %615 : vector<8x128xf32>
    %c145 = arith.constant 145 : index
    %617 = memref.load %arg1[%c145] : memref<194xf32, #tpu.memory_space<smem>>
    %618 = vector.broadcast %617 : f32 to vector<8x128xf32>
    %619 = arith.mulf %153, %618 : vector<8x128xf32>
    %c146 = arith.constant 146 : index
    %620 = memref.load %arg1[%c146] : memref<194xf32, #tpu.memory_space<smem>>
    %621 = vector.broadcast %620 : f32 to vector<8x128xf32>
    %622 = arith.mulf %177, %621 : vector<8x128xf32>
    %c147 = arith.constant 147 : index
    %623 = memref.load %arg1[%c147] : memref<194xf32, #tpu.memory_space<smem>>
    %624 = vector.broadcast %623 : f32 to vector<8x128xf32>
    %625 = arith.mulf %201, %624 : vector<8x128xf32>
    %c148 = arith.constant 148 : index
    %626 = memref.load %arg1[%c148] : memref<194xf32, #tpu.memory_space<smem>>
    %627 = vector.broadcast %626 : f32 to vector<8x128xf32>
    %628 = arith.mulf %225, %627 : vector<8x128xf32>
    %c149 = arith.constant 149 : index
    %629 = memref.load %arg1[%c149] : memref<194xf32, #tpu.memory_space<smem>>
    %630 = vector.broadcast %629 : f32 to vector<8x128xf32>
    %631 = arith.mulf %249, %630 : vector<8x128xf32>
    %632 = arith.addf %604, %607 : vector<8x128xf32>
    %633 = arith.addf %610, %613 : vector<8x128xf32>
    %634 = arith.addf %616, %619 : vector<8x128xf32>
    %635 = arith.addf %622, %625 : vector<8x128xf32>
    %636 = arith.addf %628, %631 : vector<8x128xf32>
    %637 = arith.addf %632, %633 : vector<8x128xf32>
    %638 = arith.addf %634, %635 : vector<8x128xf32>
    %639 = arith.addf %637, %638 : vector<8x128xf32>
    %640 = arith.addf %639, %636 : vector<8x128xf32>
    %c168 = arith.constant 168 : index
    %641 = memref.load %arg1[%c168] : memref<194xf32, #tpu.memory_space<smem>>
    %642 = vector.broadcast %641 : f32 to vector<8x128xf32>
    %643 = arith.addf %640, %642 : vector<8x128xf32>
    %cst_32 = arith.constant 0.000000e+00 : f32
    %644 = vector.broadcast %cst_32 : f32 to vector<8x128xf32>
    %645 = arith.maximumf %643, %644 : vector<8x128xf32>
    %c150 = arith.constant 150 : index
    %646 = memref.load %arg1[%c150] : memref<194xf32, #tpu.memory_space<smem>>
    %647 = vector.broadcast %646 : f32 to vector<8x128xf32>
    %648 = arith.mulf %33, %647 : vector<8x128xf32>
    %c151 = arith.constant 151 : index
    %649 = memref.load %arg1[%c151] : memref<194xf32, #tpu.memory_space<smem>>
    %650 = vector.broadcast %649 : f32 to vector<8x128xf32>
    %651 = arith.mulf %57, %650 : vector<8x128xf32>
    %c152 = arith.constant 152 : index
    %652 = memref.load %arg1[%c152] : memref<194xf32, #tpu.memory_space<smem>>
    %653 = vector.broadcast %652 : f32 to vector<8x128xf32>
    %654 = arith.mulf %81, %653 : vector<8x128xf32>
    %c153 = arith.constant 153 : index
    %655 = memref.load %arg1[%c153] : memref<194xf32, #tpu.memory_space<smem>>
    %656 = vector.broadcast %655 : f32 to vector<8x128xf32>
    %657 = arith.mulf %105, %656 : vector<8x128xf32>
    %c154 = arith.constant 154 : index
    %658 = memref.load %arg1[%c154] : memref<194xf32, #tpu.memory_space<smem>>
    %659 = vector.broadcast %658 : f32 to vector<8x128xf32>
    %660 = arith.mulf %129, %659 : vector<8x128xf32>
    %c155 = arith.constant 155 : index
    %661 = memref.load %arg1[%c155] : memref<194xf32, #tpu.memory_space<smem>>
    %662 = vector.broadcast %661 : f32 to vector<8x128xf32>
    %663 = arith.mulf %153, %662 : vector<8x128xf32>
    %c156 = arith.constant 156 : index
    %664 = memref.load %arg1[%c156] : memref<194xf32, #tpu.memory_space<smem>>
    %665 = vector.broadcast %664 : f32 to vector<8x128xf32>
    %666 = arith.mulf %177, %665 : vector<8x128xf32>
    %c157 = arith.constant 157 : index
    %667 = memref.load %arg1[%c157] : memref<194xf32, #tpu.memory_space<smem>>
    %668 = vector.broadcast %667 : f32 to vector<8x128xf32>
    %669 = arith.mulf %201, %668 : vector<8x128xf32>
    %c158 = arith.constant 158 : index
    %670 = memref.load %arg1[%c158] : memref<194xf32, #tpu.memory_space<smem>>
    %671 = vector.broadcast %670 : f32 to vector<8x128xf32>
    %672 = arith.mulf %225, %671 : vector<8x128xf32>
    %c159 = arith.constant 159 : index
    %673 = memref.load %arg1[%c159] : memref<194xf32, #tpu.memory_space<smem>>
    %674 = vector.broadcast %673 : f32 to vector<8x128xf32>
    %675 = arith.mulf %249, %674 : vector<8x128xf32>
    %676 = arith.addf %648, %651 : vector<8x128xf32>
    %677 = arith.addf %654, %657 : vector<8x128xf32>
    %678 = arith.addf %660, %663 : vector<8x128xf32>
    %679 = arith.addf %666, %669 : vector<8x128xf32>
    %680 = arith.addf %672, %675 : vector<8x128xf32>
    %681 = arith.addf %676, %677 : vector<8x128xf32>
    %682 = arith.addf %678, %679 : vector<8x128xf32>
    %683 = arith.addf %681, %682 : vector<8x128xf32>
    %684 = arith.addf %683, %680 : vector<8x128xf32>
    %c169 = arith.constant 169 : index
    %685 = memref.load %arg1[%c169] : memref<194xf32, #tpu.memory_space<smem>>
    %686 = vector.broadcast %685 : f32 to vector<8x128xf32>
    %687 = arith.addf %684, %686 : vector<8x128xf32>
    %cst_33 = arith.constant 0.000000e+00 : f32
    %688 = vector.broadcast %cst_33 : f32 to vector<8x128xf32>
    %689 = arith.maximumf %687, %688 : vector<8x128xf32>
    %c170 = arith.constant 170 : index
    %690 = memref.load %arg1[%c170] : memref<194xf32, #tpu.memory_space<smem>>
    %691 = vector.broadcast %690 : f32 to vector<8x128xf32>
    %692 = arith.mulf %293, %691 : vector<8x128xf32>
    %c171 = arith.constant 171 : index
    %693 = memref.load %arg1[%c171] : memref<194xf32, #tpu.memory_space<smem>>
    %694 = vector.broadcast %693 : f32 to vector<8x128xf32>
    %695 = arith.mulf %337, %694 : vector<8x128xf32>
    %c172 = arith.constant 172 : index
    %696 = memref.load %arg1[%c172] : memref<194xf32, #tpu.memory_space<smem>>
    %697 = vector.broadcast %696 : f32 to vector<8x128xf32>
    %698 = arith.mulf %381, %697 : vector<8x128xf32>
    %c173 = arith.constant 173 : index
    %699 = memref.load %arg1[%c173] : memref<194xf32, #tpu.memory_space<smem>>
    %700 = vector.broadcast %699 : f32 to vector<8x128xf32>
    %701 = arith.mulf %425, %700 : vector<8x128xf32>
    %c174 = arith.constant 174 : index
    %702 = memref.load %arg1[%c174] : memref<194xf32, #tpu.memory_space<smem>>
    %703 = vector.broadcast %702 : f32 to vector<8x128xf32>
    %704 = arith.mulf %469, %703 : vector<8x128xf32>
    %c175 = arith.constant 175 : index
    %705 = memref.load %arg1[%c175] : memref<194xf32, #tpu.memory_space<smem>>
    %706 = vector.broadcast %705 : f32 to vector<8x128xf32>
    %707 = arith.mulf %513, %706 : vector<8x128xf32>
    %c176 = arith.constant 176 : index
    %708 = memref.load %arg1[%c176] : memref<194xf32, #tpu.memory_space<smem>>
    %709 = vector.broadcast %708 : f32 to vector<8x128xf32>
    %710 = arith.mulf %557, %709 : vector<8x128xf32>
    %c177 = arith.constant 177 : index
    %711 = memref.load %arg1[%c177] : memref<194xf32, #tpu.memory_space<smem>>
    %712 = vector.broadcast %711 : f32 to vector<8x128xf32>
    %713 = arith.mulf %601, %712 : vector<8x128xf32>
    %c178 = arith.constant 178 : index
    %714 = memref.load %arg1[%c178] : memref<194xf32, #tpu.memory_space<smem>>
    %715 = vector.broadcast %714 : f32 to vector<8x128xf32>
    %716 = arith.mulf %645, %715 : vector<8x128xf32>
    %c179 = arith.constant 179 : index
    %717 = memref.load %arg1[%c179] : memref<194xf32, #tpu.memory_space<smem>>
    %718 = vector.broadcast %717 : f32 to vector<8x128xf32>
    %719 = arith.mulf %689, %718 : vector<8x128xf32>
    %720 = arith.addf %692, %695 : vector<8x128xf32>
    %721 = arith.addf %698, %701 : vector<8x128xf32>
    %722 = arith.addf %704, %707 : vector<8x128xf32>
    %723 = arith.addf %710, %713 : vector<8x128xf32>
    %724 = arith.addf %716, %719 : vector<8x128xf32>
    %725 = arith.addf %720, %721 : vector<8x128xf32>
    %726 = arith.addf %722, %723 : vector<8x128xf32>
    %727 = arith.addf %725, %726 : vector<8x128xf32>
    %728 = arith.addf %727, %724 : vector<8x128xf32>
    %c190 = arith.constant 190 : index
    %729 = memref.load %arg1[%c190] : memref<194xf32, #tpu.memory_space<smem>>
    %730 = vector.broadcast %729 : f32 to vector<8x128xf32>
    %731 = arith.addf %728, %730 : vector<8x128xf32>
    %732 = math.tanh %731 : vector<8x128xf32>
    %c180 = arith.constant 180 : index
    %733 = memref.load %arg1[%c180] : memref<194xf32, #tpu.memory_space<smem>>
    %734 = vector.broadcast %733 : f32 to vector<8x128xf32>
    %735 = arith.mulf %293, %734 : vector<8x128xf32>
    %c181 = arith.constant 181 : index
    %736 = memref.load %arg1[%c181] : memref<194xf32, #tpu.memory_space<smem>>
    %737 = vector.broadcast %736 : f32 to vector<8x128xf32>
    %738 = arith.mulf %337, %737 : vector<8x128xf32>
    %c182 = arith.constant 182 : index
    %739 = memref.load %arg1[%c182] : memref<194xf32, #tpu.memory_space<smem>>
    %740 = vector.broadcast %739 : f32 to vector<8x128xf32>
    %741 = arith.mulf %381, %740 : vector<8x128xf32>
    %c183 = arith.constant 183 : index
    %742 = memref.load %arg1[%c183] : memref<194xf32, #tpu.memory_space<smem>>
    %743 = vector.broadcast %742 : f32 to vector<8x128xf32>
    %744 = arith.mulf %425, %743 : vector<8x128xf32>
    %c184 = arith.constant 184 : index
    %745 = memref.load %arg1[%c184] : memref<194xf32, #tpu.memory_space<smem>>
    %746 = vector.broadcast %745 : f32 to vector<8x128xf32>
    %747 = arith.mulf %469, %746 : vector<8x128xf32>
    %c185 = arith.constant 185 : index
    %748 = memref.load %arg1[%c185] : memref<194xf32, #tpu.memory_space<smem>>
    %749 = vector.broadcast %748 : f32 to vector<8x128xf32>
    %750 = arith.mulf %513, %749 : vector<8x128xf32>
    %c186 = arith.constant 186 : index
    %751 = memref.load %arg1[%c186] : memref<194xf32, #tpu.memory_space<smem>>
    %752 = vector.broadcast %751 : f32 to vector<8x128xf32>
    %753 = arith.mulf %557, %752 : vector<8x128xf32>
    %c187 = arith.constant 187 : index
    %754 = memref.load %arg1[%c187] : memref<194xf32, #tpu.memory_space<smem>>
    %755 = vector.broadcast %754 : f32 to vector<8x128xf32>
    %756 = arith.mulf %601, %755 : vector<8x128xf32>
    %c188 = arith.constant 188 : index
    %757 = memref.load %arg1[%c188] : memref<194xf32, #tpu.memory_space<smem>>
    %758 = vector.broadcast %757 : f32 to vector<8x128xf32>
    %759 = arith.mulf %645, %758 : vector<8x128xf32>
    %c189 = arith.constant 189 : index
    %760 = memref.load %arg1[%c189] : memref<194xf32, #tpu.memory_space<smem>>
    %761 = vector.broadcast %760 : f32 to vector<8x128xf32>
    %762 = arith.mulf %689, %761 : vector<8x128xf32>
    %763 = arith.addf %735, %738 : vector<8x128xf32>
    %764 = arith.addf %741, %744 : vector<8x128xf32>
    %765 = arith.addf %747, %750 : vector<8x128xf32>
    %766 = arith.addf %753, %756 : vector<8x128xf32>
    %767 = arith.addf %759, %762 : vector<8x128xf32>
    %768 = arith.addf %763, %764 : vector<8x128xf32>
    %769 = arith.addf %765, %766 : vector<8x128xf32>
    %770 = arith.addf %768, %769 : vector<8x128xf32>
    %771 = arith.addf %770, %767 : vector<8x128xf32>
    %c191 = arith.constant 191 : index
    %772 = memref.load %arg1[%c191] : memref<194xf32, #tpu.memory_space<smem>>
    %773 = vector.broadcast %772 : f32 to vector<8x128xf32>
    %774 = arith.addf %771, %773 : vector<8x128xf32>
    %775 = math.tanh %774 : vector<8x128xf32>
    %c192 = arith.constant 192 : index
    %776 = memref.load %arg1[%c192] : memref<194xf32, #tpu.memory_space<smem>>
    %777 = vector.broadcast %776 : f32 to vector<8x128xf32>
    %778 = arith.mulf %732, %777 : vector<8x128xf32>
    %c0_34 = arith.constant 0 : index
    %c0_35 = arith.constant 0 : index
    %c0_36 = arith.constant 0 : index
    %779 = vector.load %arg3[%c0_34, %c0_35, %c0_36] : memref<2x8x128xf32, #tpu.memory_space<vmem>>, vector<1x8x128xf32>
    %780 = vector.shape_cast %779 : vector<1x8x128xf32> to vector<8x128xf32>
    %781 = vector.shape_cast %778 : vector<8x128xf32> to vector<1x8x128xf32>
    tpu.vector_store %arg3[%c0_34, %c0_35, %c0_36], %781 {strides = array<i32>} : memref<2x8x128xf32, #tpu.memory_space<vmem>>, vector<1x8x128xf32>,
    %c193 = arith.constant 193 : index
    %782 = memref.load %arg1[%c193] : memref<194xf32, #tpu.memory_space<smem>>
    %783 = vector.broadcast %782 : f32 to vector<8x128xf32>
    %784 = arith.mulf %775, %783 : vector<8x128xf32>
    %c1_37 = arith.constant 1 : index
    %c0_38 = arith.constant 0 : index
    %c0_39 = arith.constant 0 : index
    %785 = vector.load %arg3[%c1_37, %c0_38, %c0_39] : memref<2x8x128xf32, #tpu.memory_space<vmem>>, vector<1x8x128xf32>
    %786 = vector.shape_cast %785 : vector<1x8x128xf32> to vector<8x128xf32>
    %787 = vector.shape_cast %784 : vector<8x128xf32> to vector<1x8x128xf32>
    tpu.vector_store %arg3[%c1_37, %c0_38, %c0_39], %787 {strides = array<i32>} : memref<2x8x128xf32, #tpu.memory_space<vmem>>, vector<1x8x128xf32>,
    return
  }
  func.func @transform_0(%arg0: i32) -> i32 {
    %c0_i32 = arith.constant 0 : i32
    %c0_i32_0 = arith.constant 0 : i32
    return %c0_i32 : i32
  }
  func.func @transform_1(%arg0: i32) -> (i32, i32, i32) {
    %c0_i32 = arith.constant 0 : i32
    %c0_i32_0 = arith.constant 0 : i32
    %c0_i32_1 = arith.constant 0 : i32
    return %c0_i32, %arg0, %c0_i32_0 : i32, i32, i32
  }
  func.func @transform_2(%arg0: i32) -> (i32, i32, i32) {
    %c0_i32 = arith.constant 0 : i32
    %c0_i32_0 = arith.constant 0 : i32
    %c0_i32_1 = arith.constant 0 : i32
    return %c0_i32, %arg0, %c0_i32_0 : i32, i32, i32
  }
}

</mosaic_0001>

<llo_original>
// kernel: neural_network_forward.1
$region0: #{neural_network_forward.1}
  #allocation0 [shape = 'u32[]', space=smem, size = 0x4, offset = 0x4, fixed_abs, tag = 'smem constant byte address 0x4 - core index']
  #allocation1 [shape = 'u32[144,128]{1,0:T(1,128)}', space=vmem, size = 0x12000, scoped, tag = 'internal scratch']
  %s0 = inlined_call_operand.vmem [shape: f32[194], index: 0, kind: input, shape index: {}]
  %s1 = inlined_call_operand.vmem [shape: f32[5,8,128], index: 1, kind: input, shape index: {}]
  %s2 = inlined_call_operand.vmem [shape: f32[2,8,128], index: 2, kind: output, shape index: {}]
  %s3 = sld [smem:[#allocation0]]
  $region22: #{neural_network_forward.1} parent=0
    _
  %s5 = ssub.s32 1, %s3
  %s6 = scalar_select 0, %s5, %s3
  $region1: #{neural_network_forward.1} parent=0
    #allocation2 [shape = 'u8[1024]{0}', space=smem, size = 0x400, scoped, tag = 'input window, operand 0, single buffered']
    #allocation3 [shape = 's32[1]{0}', space=sflag, size = 0x4, scoped, tag = 'scoped memory for neural_network_forward.1']
    %7 = vsyncpa [#allocation3], 0
    // Predicated region
    $region2: #{neural_network_forward.1} parent=1 // pred_check
      _
    $region3: #{neural_network_forward.1} parent=1 // pred_check_branch
      %9 = sbr.rel (0) target = $region5
    $region4: #{neural_network_forward.1} parent=1 // pred_region
      %s11 = ssub.s32 32, 32
      %12 = vsyncadd [#allocation3], %s11
      %s14 = sshll.u32 %s0, 4
      %s15 = int_to_ptr.vmem [resolvable:$true] %s14
      %17 = dma.vmem_to_smem %s15, 32, [#allocation2], [#allocation3]
    $region5: #{neural_network_forward.1} parent=1 // pred_fallthru
      _
    // Predicated region
    $region6: #{neural_network_forward.1} parent=1 // pred_check
      _
    $region7: #{neural_network_forward.1} parent=1 // pred_check_branch
      %19 = sbr.rel (0) target = $region9
    $region8: #{neural_network_forward.1} parent=1 // pred_region
      _
    $region9: #{neural_network_forward.1} parent=1 // pred_fallthru
      _
    // Predicated region
    $region10: #{neural_network_forward.1} parent=1 // pred_check
      _
    $region11: #{neural_network_forward.1} parent=1 // pred_check_branch
      %21 = sbr.rel (0) target = $region13
    $region12: #{neural_network_forward.1} parent=1 // pred_region
      %22 = dma.done [#allocation3], 32
    $region13: #{neural_network_forward.1} parent=1 // pred_fallthru
      _
    %23 = sfence
    %v24 = vld [vmem:[%s1] sm:$0xff]
    %s25 = scalar_lea.vmem %s1, 8
    %v26 = vld [vmem:[%s25] sm:$0xff]
    %s27 = scalar_lea.vmem %s1, 16
    %v28 = vld [vmem:[%s27] sm:$0xff]
    %s29 = scalar_lea.vmem %s1, 24
    %v30 = vld [vmem:[%s29] sm:$0xff]
    %s31 = scalar_lea.vmem %s1, 32
    %v32 = vld [vmem:[%s31] sm:$0xff]
    %s33 = sld [smem:[#allocation2]]
    %v34 = vstv %s33
    %v35 = vmul.f32 %v24, %v34
    %s36 = sld [smem:[#allocation2 + $0x1]]
    %v37 = vstv %s36
    %v38 = vmul.f32 %v26, %v37
    %s39 = sld [smem:[#allocation2 + $0x2]]
    %v40 = vstv %s39
    %v41 = vmul.f32 %v28, %v40
    %s42 = sld [smem:[#allocation2 + $0x3]]
    %v43 = vstv %s42
    %v44 = vmul.f32 %v30, %v43
    %s45 = sld [smem:[#allocation2 + $0x4]]
    %v46 = vstv %s45
    %v47 = vmul.f32 %v32, %v46
    %v48 = vadd.f32 %v35, %v38
    %v49 = vadd.f32 %v41, %v44
    %v50 = vadd.f32 %v48, %v49
    %v51 = vadd.f32 %v50, %v47
    %s52 = sld [smem:[#allocation2 + $0x32]]
    %v53 = vstv %s52
    %v54 = vadd.f32 %v51, %v53
    %v55 = vmax.f32 %v54, 0.0
    %s56 = sld [smem:[#allocation2 + $0x5]]
    %v57 = vstv %s56
    %v58 = vmul.f32 %v24, %v57
    %s59 = sld [smem:[#allocation2 + $0x6]]
    %v60 = vstv %s59
    %v61 = vmul.f32 %v26, %v60
    %s62 = sld [smem:[#allocation2 + $0x7]]
    %v63 = vstv %s62
    %v64 = vmul.f32 %v28, %v63
    %s65 = sld [smem:[#allocation2 + $0x8]]
    %v66 = vstv %s65
    %v67 = vmul.f32 %v30, %v66
    %s68 = sld [smem:[#allocation2 + $0x9]]
    %v69 = vstv %s68
    %v70 = vmul.f32 %v32, %v69
    %v71 = vadd.f32 %v58, %v61
    %v72 = vadd.f32 %v64, %v67
    %v73 = vadd.f32 %v71, %v72
    %v74 = vadd.f32 %v73, %v70
    %s75 = sld [smem:[#allocation2 + $0x33]]
    %v76 = vstv %s75
    %v77 = vadd.f32 %v74, %v76
    %v78 = vmax.f32 %v77, 0.0
    %s79 = sld [smem:[#allocation2 + $0xa]]
    %v80 = vstv %s79
    %v81 = vmul.f32 %v24, %v80
    %s82 = sld [smem:[#allocation2 + $0xb]]
    %v83 = vstv %s82
    %v84 = vmul.f32 %v26, %v83
    %s85 = sld [smem:[#allocation2 + $0xc]]
    %v86 = vstv %s85
    %v87 = vmul.f32 %v28, %v86
    %s88 = sld [smem:[#allocation2 + $0xd]]
    %v89 = vstv %s88
    %v90 = vmul.f32 %v30, %v89
    %s91 = sld [smem:[#allocation2 + $0xe]]
    %v92 = vstv %s91
    %v93 = vmul.f32 %v32, %v92
    %v94 = vadd.f32 %v81, %v84
    %v95 = vadd.f32 %v87, %v90
    %v96 = vadd.f32 %v94, %v95
    %v97 = vadd.f32 %v96, %v93
    %s98 = sld [smem:[#allocation2 + $0x34]]
    %v99 = vstv %s98
    %v100 = vadd.f32 %v97, %v99
    %v101 = vmax.f32 %v100, 0.0
    %s102 = sld [smem:[#allocation2 + $0xf]]
    %v103 = vstv %s102
    %v104 = vmul.f32 %v24, %v103
    %s105 = sld [smem:[#allocation2 + $0x10]]
    %v106 = vstv %s105
    %v107 = vmul.f32 %v26, %v106
    %s108 = sld [smem:[#allocation2 + $0x11]]
    %v109 = vstv %s108
    %v110 = vmul.f32 %v28, %v109
    %s111 = sld [smem:[#allocation2 + $0x12]]
    %v112 = vstv %s111
    %v113 = vmul.f32 %v30, %v112
    %s114 = sld [smem:[#allocation2 + $0x13]]
    %v115 = vstv %s114
    %v116 = vmul.f32 %v32, %v115
    %v117 = vadd.f32 %v104, %v107
    %v118 = vadd.f32 %v110, %v113
    %v119 = vadd.f32 %v117, %v118
    %v120 = vadd.f32 %v119, %v116
    %s121 = sld [smem:[#allocation2 + $0x35]]
    %v122 = vstv %s121
    %v123 = vadd.f32 %v120, %v122
    %v124 = vmax.f32 %v123, 0.0
    %s125 = sld [smem:[#allocation2 + $0x14]]
    %v126 = vstv %s125
    %v127 = vmul.f32 %v24, %v126
    %s128 = sld [smem:[#allocation2 + $0x15]]
    %v129 = vstv %s128
    %v130 = vmul.f32 %v26, %v129
    %s131 = sld [smem:[#allocation2 + $0x16]]
    %v132 = vstv %s131
    %v133 = vmul.f32 %v28, %v132
    %s134 = sld [smem:[#allocation2 + $0x17]]
    %v135 = vstv %s134
    %v136 = vmul.f32 %v30, %v135
    %s137 = sld [smem:[#allocation2 + $0x18]]
    %v138 = vstv %s137
    %v139 = vmul.f32 %v32, %v138
    %v140 = vadd.f32 %v127, %v130
    %v141 = vadd.f32 %v133, %v136
    %v142 = vadd.f32 %v140, %v141
    %v143 = vadd.f32 %v142, %v139
    %s144 = sld [smem:[#allocation2 + $0x36]]
    %v145 = vstv %s144
    %v146 = vadd.f32 %v143, %v145
    %v147 = vmax.f32 %v146, 0.0
    %s148 = sld [smem:[#allocation2 + $0x19]]
    %v149 = vstv %s148
    %v150 = vmul.f32 %v24, %v149
    %s151 = sld [smem:[#allocation2 + $0x1a]]
    %v152 = vstv %s151
    %v153 = vmul.f32 %v26, %v152
    %s154 = sld [smem:[#allocation2 + $0x1b]]
    %v155 = vstv %s154
    %v156 = vmul.f32 %v28, %v155
    %s157 = sld [smem:[#allocation2 + $0x1c]]
    %v158 = vstv %s157
    %v159 = vmul.f32 %v30, %v158
    %s160 = sld [smem:[#allocation2 + $0x1d]]
    %v161 = vstv %s160
    %v162 = vmul.f32 %v32, %v161
    %v163 = vadd.f32 %v150, %v153
    %v164 = vadd.f32 %v156, %v159
    %v165 = vadd.f32 %v163, %v164
    %v166 = vadd.f32 %v165, %v162
    %s167 = sld [smem:[#allocation2 + $0x37]]
    %v168 = vstv %s167
    %v169 = vadd.f32 %v166, %v168
    %v170 = vmax.f32 %v169, 0.0
    %s171 = sld [smem:[#allocation2 + $0x1e]]
    %v172 = vstv %s171
    %v173 = vmul.f32 %v24, %v172
    %s174 = sld [smem:[#allocation2 + $0x1f]]
    %v175 = vstv %s174
    %v176 = vmul.f32 %v26, %v175
    %s177 = sld [smem:[#allocation2 + $0x20]]
    %v178 = vstv %s177
    %v179 = vmul.f32 %v28, %v178
    %s180 = sld [smem:[#allocation2 + $0x21]]
    %v181 = vstv %s180
    %v182 = vmul.f32 %v30, %v181
    %s183 = sld [smem:[#allocation2 + $0x22]]
    %v184 = vstv %s183
    %v185 = vmul.f32 %v32, %v184
    %v186 = vadd.f32 %v173, %v176
    %v187 = vadd.f32 %v179, %v182
    %v188 = vadd.f32 %v186, %v187
    %v189 = vadd.f32 %v188, %v185
    %s190 = sld [smem:[#allocation2 + $0x38]]
    %v191 = vstv %s190
    %v192 = vadd.f32 %v189, %v191
    %v193 = vmax.f32 %v192, 0.0
    %s194 = sld [smem:[#allocation2 + $0x23]]
    %v195 = vstv %s194
    %v196 = vmul.f32 %v24, %v195
    %s197 = sld [smem:[#allocation2 + $0x24]]
    %v198 = vstv %s197
    %v199 = vmul.f32 %v26, %v198
    %s200 = sld [smem:[#allocation2 + $0x25]]
    %v201 = vstv %s200
    %v202 = vmul.f32 %v28, %v201
    %s203 = sld [smem:[#allocation2 + $0x26]]
    %v204 = vstv %s203
    %v205 = vmul.f32 %v30, %v204
    %s206 = sld [smem:[#allocation2 + $0x27]]
    %v207 = vstv %s206
    %v208 = vmul.f32 %v32, %v207
    %v209 = vadd.f32 %v196, %v199
    %v210 = vadd.f32 %v202, %v205
    %v211 = vadd.f32 %v209, %v210
    %v212 = vadd.f32 %v211, %v208
    %s213 = sld [smem:[#allocation2 + $0x39]]
    %v214 = vstv %s213
    %v215 = vadd.f32 %v212, %v214
    %v216 = vmax.f32 %v215, 0.0
    %s217 = sld [smem:[#allocation2 + $0x28]]
    %v218 = vstv %s217
    %v219 = vmul.f32 %v24, %v218
    %s220 = sld [smem:[#allocation2 + $0x29]]
    %v221 = vstv %s220
    %v222 = vmul.f32 %v26, %v221
    %s223 = sld [smem:[#allocation2 + $0x2a]]
    %v224 = vstv %s223
    %v225 = vmul.f32 %v28, %v224
    %s226 = sld [smem:[#allocation2 + $0x2b]]
    %v227 = vstv %s226
    %v228 = vmul.f32 %v30, %v227
    %s229 = sld [smem:[#allocation2 + $0x2c]]
    %v230 = vstv %s229
    %v231 = vmul.f32 %v32, %v230
    %v232 = vadd.f32 %v219, %v222
    %v233 = vadd.f32 %v225, %v228
    %v234 = vadd.f32 %v232, %v233
    %v235 = vadd.f32 %v234, %v231
    %s236 = sld [smem:[#allocation2 + $0x3a]]
    %v237 = vstv %s236
    %v238 = vadd.f32 %v235, %v237
    %v239 = vmax.f32 %v238, 0.0
    %s240 = sld [smem:[#allocation2 + $0x2d]]
    %v241 = vstv %s240
    %v242 = vmul.f32 %v24, %v241
    %s243 = sld [smem:[#allocation2 + $0x2e]]
    %v244 = vstv %s243
    %v245 = vmul.f32 %v26, %v244
    %s246 = sld [smem:[#allocation2 + $0x2f]]
    %v247 = vstv %s246
    %v248 = vmul.f32 %v28, %v247
    %s249 = sld [smem:[#allocation2 + $0x30]]
    %v250 = vstv %s249
    %v251 = vmul.f32 %v30, %v250
    %s252 = sld [smem:[#allocation2 + $0x31]]
    %v253 = vstv %s252
    %v254 = vmul.f32 %v32, %v253
    %v255 = vadd.f32 %v242, %v245
    %v256 = vadd.f32 %v248, %v251
    %v257 = vadd.f32 %v255, %v256
    %v258 = vadd.f32 %v257, %v254
    %s259 = sld [smem:[#allocation2 + $0x3b]]
    %v260 = vstv %s259
    %v261 = vadd.f32 %v258, %v260
    %v262 = vmax.f32 %v261, 0.0
    %s263 = sld [smem:[#allocation2 + $0x3c]]
    %v264 = vstv %s263
    %v265 = vmul.f32 %v55, %v264
    %s266 = sld [smem:[#allocation2 + $0x3d]]
    %v267 = vstv %s266
    %v268 = vmul.f32 %v78, %v267
    %s269 = sld [smem:[#allocation2 + $0x3e]]
    %v270 = vstv %s269
    %v271 = vmul.f32 %v101, %v270
    %s272 = sld [smem:[#allocation2 + $0x3f]]
    %v273 = vstv %s272
    %v274 = vmul.f32 %v124, %v273
    %s275 = sld [smem:[#allocation2 + $0x40]]
    %v276 = vstv %s275
    %v277 = vmul.f32 %v147, %v276
    %s278 = sld [smem:[#allocation2 + $0x41]]
    %v279 = vstv %s278
    %v280 = vmul.f32 %v170, %v279
    %s281 = sld [smem:[#allocation2 + $0x42]]
    %v282 = vstv %s281
    %v283 = vmul.f32 %v193, %v282
    %s284 = sld [smem:[#allocation2 + $0x43]]
    %v285 = vstv %s284
    %v286 = vmul.f32 %v216, %v285
    %s287 = sld [smem:[#allocation2 + $0x44]]
    %v288 = vstv %s287
    %v289 = vmul.f32 %v239, %v288
    %s290 = sld [smem:[#allocation2 + $0x45]]
    %v291 = vstv %s290
    %v292 = vmul.f32 %v262, %v291
    %v293 = vadd.f32 %v265, %v268
    %v294 = vadd.f32 %v271, %v274
    %v295 = vadd.f32 %v277, %v280
    %v296 = vadd.f32 %v283, %v286
    %v297 = vadd.f32 %v289, %v292
    %v298 = vadd.f32 %v293, %v294
    %v299 = vadd.f32 %v295, %v296
    %v300 = vadd.f32 %v298, %v299
    %v301 = vadd.f32 %v300, %v297
    %s302 = sld [smem:[#allocation2 + $0xa0]]
    %v303 = vstv %s302
    %v304 = vadd.f32 %v301, %v303
    %v305 = vmax.f32 %v304, 0.0
    %s306 = sld [smem:[#allocation2 + $0x46]]
    %v307 = vstv %s306
    %v308 = vmul.f32 %v55, %v307
    %s309 = sld [smem:[#allocation2 + $0x47]]
    %v310 = vstv %s309
    %v311 = vmul.f32 %v78, %v310
    %s312 = sld [smem:[#allocation2 + $0x48]]
    %v313 = vstv %s312
    %v314 = vmul.f32 %v101, %v313
    %s315 = sld [smem:[#allocation2 + $0x49]]
    %v316 = vstv %s315
    %v317 = vmul.f32 %v124, %v316
    %s318 = sld [smem:[#allocation2 + $0x4a]]
    %v319 = vstv %s318
    %v320 = vmul.f32 %v147, %v319
    %s321 = sld [smem:[#allocation2 + $0x4b]]
    %v322 = vstv %s321
    %v323 = vmul.f32 %v170, %v322
    %s324 = sld [smem:[#allocation2 + $0x4c]]
    %v325 = vstv %s324
    %v326 = vmul.f32 %v193, %v325
    %s327 = sld [smem:[#allocation2 + $0x4d]]
    %v328 = vstv %s327
    %v329 = vmul.f32 %v216, %v328
    %s330 = sld [smem:[#allocation2 + $0x4e]]
    %v331 = vstv %s330
    %v332 = vmul.f32 %v239, %v331
    %s333 = sld [smem:[#allocation2 + $0x4f]]
    %v334 = vstv %s333
    %v335 = vmul.f32 %v262, %v334
    %v336 = vadd.f32 %v308, %v311
    %v337 = vadd.f32 %v314, %v317
    %v338 = vadd.f32 %v320, %v323
    %v339 = vadd.f32 %v326, %v329
    %v340 = vadd.f32 %v332, %v335
    %v341 = vadd.f32 %v336, %v337
    %v342 = vadd.f32 %v338, %v339
    %v343 = vadd.f32 %v341, %v342
    %v344 = vadd.f32 %v343, %v340
    %s345 = sld [smem:[#allocation2 + $0xa1]]
    %v346 = vstv %s345
    %v347 = vadd.f32 %v344, %v346
    %v348 = vmax.f32 %v347, 0.0
    %s349 = sld [smem:[#allocation2 + $0x50]]
    %v350 = vstv %s349
    %v351 = vmul.f32 %v55, %v350
    %s352 = sld [smem:[#allocation2 + $0x51]]
    %v353 = vstv %s352
    %v354 = vmul.f32 %v78, %v353
    %s355 = sld [smem:[#allocation2 + $0x52]]
    %v356 = vstv %s355
    %v357 = vmul.f32 %v101, %v356
    %s358 = sld [smem:[#allocation2 + $0x53]]
    %v359 = vstv %s358
    %v360 = vmul.f32 %v124, %v359
    %s361 = sld [smem:[#allocation2 + $0x54]]
    %v362 = vstv %s361
    %v363 = vmul.f32 %v147, %v362
    %s364 = sld [smem:[#allocation2 + $0x55]]
    %v365 = vstv %s364
    %v366 = vmul.f32 %v170, %v365
    %s367 = sld [smem:[#allocation2 + $0x56]]
    %v368 = vstv %s367
    %v369 = vmul.f32 %v193, %v368
    %s370 = sld [smem:[#allocation2 + $0x57]]
    %v371 = vstv %s370
    %v372 = vmul.f32 %v216, %v371
    %s373 = sld [smem:[#allocation2 + $0x58]]
    %v374 = vstv %s373
    %v375 = vmul.f32 %v239, %v374
    %s376 = sld [smem:[#allocation2 + $0x59]]
    %v377 = vstv %s376
    %v378 = vmul.f32 %v262, %v377
    %v379 = vadd.f32 %v351, %v354
    %v380 = vadd.f32 %v357, %v360
    %v381 = vadd.f32 %v363, %v366
    %v382 = vadd.f32 %v369, %v372
    %v383 = vadd.f32 %v375, %v378
    %v384 = vadd.f32 %v379, %v380
    %v385 = vadd.f32 %v381, %v382
    %v386 = vadd.f32 %v384, %v385
    %v387 = vadd.f32 %v386, %v383
    %s388 = sld [smem:[#allocation2 + $0xa2]]
    %v389 = vstv %s388
    %v390 = vadd.f32 %v387, %v389
    %v391 = vmax.f32 %v390, 0.0
    %s392 = sld [smem:[#allocation2 + $0x5a]]
    %v393 = vstv %s392
    %v394 = vmul.f32 %v55, %v393
    %s395 = sld [smem:[#allocation2 + $0x5b]]
    %v396 = vstv %s395
    %v397 = vmul.f32 %v78, %v396
    %s398 = sld [smem:[#allocation2 + $0x5c]]
    %v399 = vstv %s398
    %v400 = vmul.f32 %v101, %v399
    %s401 = sld [smem:[#allocation2 + $0x5d]]
    %v402 = vstv %s401
    %v403 = vmul.f32 %v124, %v402
    %s404 = sld [smem:[#allocation2 + $0x5e]]
    %v405 = vstv %s404
    %v406 = vmul.f32 %v147, %v405
    %s407 = sld [smem:[#allocation2 + $0x5f]]
    %v408 = vstv %s407
    %v409 = vmul.f32 %v170, %v408
    %s410 = sld [smem:[#allocation2 + $0x60]]
    %v411 = vstv %s410
    %v412 = vmul.f32 %v193, %v411
    %s413 = sld [smem:[#allocation2 + $0x61]]
    %v414 = vstv %s413
    %v415 = vmul.f32 %v216, %v414
    %s416 = sld [smem:[#allocation2 + $0x62]]
    %v417 = vstv %s416
    %v418 = vmul.f32 %v239, %v417
    %s419 = sld [smem:[#allocation2 + $0x63]]
    %v420 = vstv %s419
    %v421 = vmul.f32 %v262, %v420
    %v422 = vadd.f32 %v394, %v397
    %v423 = vadd.f32 %v400, %v403
    %v424 = vadd.f32 %v406, %v409
    %v425 = vadd.f32 %v412, %v415
    %v426 = vadd.f32 %v418, %v421
    %v427 = vadd.f32 %v422, %v423
    %v428 = vadd.f32 %v424, %v425
    %v429 = vadd.f32 %v427, %v428
    %v430 = vadd.f32 %v429, %v426
    %s431 = sld [smem:[#allocation2 + $0xa3]]
    %v432 = vstv %s431
    %v433 = vadd.f32 %v430, %v432
    %v434 = vmax.f32 %v433, 0.0
    %s435 = sld [smem:[#allocation2 + $0x64]]
    %v436 = vstv %s435
    %v437 = vmul.f32 %v55, %v436
    %s438 = sld [smem:[#allocation2 + $0x65]]
    %v439 = vstv %s438
    %v440 = vmul.f32 %v78, %v439
    %s441 = sld [smem:[#allocation2 + $0x66]]
    %v442 = vstv %s441
    %v443 = vmul.f32 %v101, %v442
    %s444 = sld [smem:[#allocation2 + $0x67]]
    %v445 = vstv %s444
    %v446 = vmul.f32 %v124, %v445
    %s447 = sld [smem:[#allocation2 + $0x68]]
    %v448 = vstv %s447
    %v449 = vmul.f32 %v147, %v448
    %s450 = sld [smem:[#allocation2 + $0x69]]
    %v451 = vstv %s450
    %v452 = vmul.f32 %v170, %v451
    %s453 = sld [smem:[#allocation2 + $0x6a]]
    %v454 = vstv %s453
    %v455 = vmul.f32 %v193, %v454
    %s456 = sld [smem:[#allocation2 + $0x6b]]
    %v457 = vstv %s456
    %v458 = vmul.f32 %v216, %v457
    %s459 = sld [smem:[#allocation2 + $0x6c]]
    %v460 = vstv %s459
    %v461 = vmul.f32 %v239, %v460
    %s462 = sld [smem:[#allocation2 + $0x6d]]
    %v463 = vstv %s462
    %v464 = vmul.f32 %v262, %v463
    %v465 = vadd.f32 %v437, %v440
    %v466 = vadd.f32 %v443, %v446
    %v467 = vadd.f32 %v449, %v452
    %v468 = vadd.f32 %v455, %v458
    %v469 = vadd.f32 %v461, %v464
    %v470 = vadd.f32 %v465, %v466
    %v471 = vadd.f32 %v467, %v468
    %v472 = vadd.f32 %v470, %v471
    %v473 = vadd.f32 %v472, %v469
    %s474 = sld [smem:[#allocation2 + $0xa4]]
    %v475 = vstv %s474
    %v476 = vadd.f32 %v473, %v475
    %v477 = vmax.f32 %v476, 0.0
    %s478 = sld [smem:[#allocation2 + $0x6e]]
    %v479 = vstv %s478
    %v480 = vmul.f32 %v55, %v479
    %s481 = sld [smem:[#allocation2 + $0x6f]]
    %v482 = vstv %s481
    %v483 = vmul.f32 %v78, %v482
    %s484 = sld [smem:[#allocation2 + $0x70]]
    %v485 = vstv %s484
    %v486 = vmul.f32 %v101, %v485
    %s487 = sld [smem:[#allocation2 + $0x71]]
    %v488 = vstv %s487
    %v489 = vmul.f32 %v124, %v488
    %s490 = sld [smem:[#allocation2 + $0x72]]
    %v491 = vstv %s490
    %v492 = vmul.f32 %v147, %v491
    %s493 = sld [smem:[#allocation2 + $0x73]]
    %v494 = vstv %s493
    %v495 = vmul.f32 %v170, %v494
    %s496 = sld [smem:[#allocation2 + $0x74]]
    %v497 = vstv %s496
    %v498 = vmul.f32 %v193, %v497
    %s499 = sld [smem:[#allocation2 + $0x75]]
    %v500 = vstv %s499
    %v501 = vmul.f32 %v216, %v500
    %s502 = sld [smem:[#allocation2 + $0x76]]
    %v503 = vstv %s502
    %v504 = vmul.f32 %v239, %v503
    %s505 = sld [smem:[#allocation2 + $0x77]]
    %v506 = vstv %s505
    %v507 = vmul.f32 %v262, %v506
    %v508 = vadd.f32 %v480, %v483
    %v509 = vadd.f32 %v486, %v489
    %v510 = vadd.f32 %v492, %v495
    %v511 = vadd.f32 %v498, %v501
    %v512 = vadd.f32 %v504, %v507
    %v513 = vadd.f32 %v508, %v509
    %v514 = vadd.f32 %v510, %v511
    %v515 = vadd.f32 %v513, %v514
    %v516 = vadd.f32 %v515, %v512
    %s517 = sld [smem:[#allocation2 + $0xa5]]
    %v518 = vstv %s517
    %v519 = vadd.f32 %v516, %v518
    %v520 = vmax.f32 %v519, 0.0
    %s521 = sld [smem:[#allocation2 + $0x78]]
    %v522 = vstv %s521
    %v523 = vmul.f32 %v55, %v522
    %s524 = sld [smem:[#allocation2 + $0x79]]
    %v525 = vstv %s524
    %v526 = vmul.f32 %v78, %v525
    %s527 = sld [smem:[#allocation2 + $0x7a]]
    %v528 = vstv %s527
    %v529 = vmul.f32 %v101, %v528
    %s530 = sld [smem:[#allocation2 + $0x7b]]
    %v531 = vstv %s530
    %v532 = vmul.f32 %v124, %v531
    %s533 = sld [smem:[#allocation2 + $0x7c]]
    %v534 = vstv %s533
    %v535 = vmul.f32 %v147, %v534
    %s536 = sld [smem:[#allocation2 + $0x7d]]
    %v537 = vstv %s536
    %v538 = vmul.f32 %v170, %v537
    %s539 = sld [smem:[#allocation2 + $0x7e]]
    %v540 = vstv %s539
    %v541 = vmul.f32 %v193, %v540
    %s542 = sld [smem:[#allocation2 + $0x7f]]
    %v543 = vstv %s542
    %v544 = vmul.f32 %v216, %v543
    %s545 = sld [smem:[#allocation2 + $0x80]]
    %v546 = vstv %s545
    %v547 = vmul.f32 %v239, %v546
    %s548 = sld [smem:[#allocation2 + $0x81]]
    %v549 = vstv %s548
    %v550 = vmul.f32 %v262, %v549
    %v551 = vadd.f32 %v523, %v526
    %v552 = vadd.f32 %v529, %v532
    %v553 = vadd.f32 %v535, %v538
    %v554 = vadd.f32 %v541, %v544
    %v555 = vadd.f32 %v547, %v550
    %v556 = vadd.f32 %v551, %v552
    %v557 = vadd.f32 %v553, %v554
    %v558 = vadd.f32 %v556, %v557
    %v559 = vadd.f32 %v558, %v555
    %s560 = sld [smem:[#allocation2 + $0xa6]]
    %v561 = vstv %s560
    %v562 = vadd.f32 %v559, %v561
    %v563 = vmax.f32 %v562, 0.0
    %s564 = sld [smem:[#allocation2 + $0x82]]
    %v565 = vstv %s564
    %v566 = vmul.f32 %v55, %v565
    %s567 = sld [smem:[#allocation2 + $0x83]]
    %v568 = vstv %s567
    %v569 = vmul.f32 %v78, %v568
    %s570 = sld [smem:[#allocation2 + $0x84]]
    %v571 = vstv %s570
    %v572 = vmul.f32 %v101, %v571
    %s573 = sld [smem:[#allocation2 + $0x85]]
    %v574 = vstv %s573
    %v575 = vmul.f32 %v124, %v574
    %s576 = sld [smem:[#allocation2 + $0x86]]
    %v577 = vstv %s576
    %v578 = vmul.f32 %v147, %v577
    %s579 = sld [smem:[#allocation2 + $0x87]]
    %v580 = vstv %s579
    %v581 = vmul.f32 %v170, %v580
    %s582 = sld [smem:[#allocation2 + $0x88]]
    %v583 = vstv %s582
    %v584 = vmul.f32 %v193, %v583
    %s585 = sld [smem:[#allocation2 + $0x89]]
    %v586 = vstv %s585
    %v587 = vmul.f32 %v216, %v586
    %s588 = sld [smem:[#allocation2 + $0x8a]]
    %v589 = vstv %s588
    %v590 = vmul.f32 %v239, %v589
    %s591 = sld [smem:[#allocation2 + $0x8b]]
    %v592 = vstv %s591
    %v593 = vmul.f32 %v262, %v592
    %v594 = vadd.f32 %v566, %v569
    %v595 = vadd.f32 %v572, %v575
    %v596 = vadd.f32 %v578, %v581
    %v597 = vadd.f32 %v584, %v587
    %v598 = vadd.f32 %v590, %v593
    %v599 = vadd.f32 %v594, %v595
    %v600 = vadd.f32 %v596, %v597
    %v601 = vadd.f32 %v599, %v600
    %v602 = vadd.f32 %v601, %v598
    %s603 = sld [smem:[#allocation2 + $0xa7]]
    %v604 = vstv %s603
    %v605 = vadd.f32 %v602, %v604
    %v606 = vmax.f32 %v605, 0.0
    %s607 = sld [smem:[#allocation2 + $0x8c]]
    %v608 = vstv %s607
    %v609 = vmul.f32 %v55, %v608
    %s610 = sld [smem:[#allocation2 + $0x8d]]
    %v611 = vstv %s610
    %v612 = vmul.f32 %v78, %v611
    %s613 = sld [smem:[#allocation2 + $0x8e]]
    %v614 = vstv %s613
    %v615 = vmul.f32 %v101, %v614
    %s616 = sld [smem:[#allocation2 + $0x8f]]
    %v617 = vstv %s616
    %v618 = vmul.f32 %v124, %v617
    %s619 = sld [smem:[#allocation2 + $0x90]]
    %v620 = vstv %s619
    %v621 = vmul.f32 %v147, %v620
    %s622 = sld [smem:[#allocation2 + $0x91]]
    %v623 = vstv %s622
    %v624 = vmul.f32 %v170, %v623
    %s625 = sld [smem:[#allocation2 + $0x92]]
    %v626 = vstv %s625
    %v627 = vmul.f32 %v193, %v626
    %s628 = sld [smem:[#allocation2 + $0x93]]
    %v629 = vstv %s628
    %v630 = vmul.f32 %v216, %v629
    %s631 = sld [smem:[#allocation2 + $0x94]]
    %v632 = vstv %s631
    %v633 = vmul.f32 %v239, %v632
    %s634 = sld [smem:[#allocation2 + $0x95]]
    %v635 = vstv %s634
    %v636 = vmul.f32 %v262, %v635
    %v637 = vadd.f32 %v609, %v612
    %v638 = vadd.f32 %v615, %v618
    %v639 = vadd.f32 %v621, %v624
    %v640 = vadd.f32 %v627, %v630
    %v641 = vadd.f32 %v633, %v636
    %v642 = vadd.f32 %v637, %v638
    %v643 = vadd.f32 %v639, %v640
    %v644 = vadd.f32 %v642, %v643
    %v645 = vadd.f32 %v644, %v641
    %s646 = sld [smem:[#allocation2 + $0xa8]]
    %v647 = vstv %s646
    %v648 = vadd.f32 %v645, %v647
    %v649 = vmax.f32 %v648, 0.0
    %s650 = sld [smem:[#allocation2 + $0x96]]
    %v651 = vstv %s650
    %v652 = vmul.f32 %v55, %v651
    %s653 = sld [smem:[#allocation2 + $0x97]]
    %v654 = vstv %s653
    %v655 = vmul.f32 %v78, %v654
    %s656 = sld [smem:[#allocation2 + $0x98]]
    %v657 = vstv %s656
    %v658 = vmul.f32 %v101, %v657
    %s659 = sld [smem:[#allocation2 + $0x99]]
    %v660 = vstv %s659
    %v661 = vmul.f32 %v124, %v660
    %s662 = sld [smem:[#allocation2 + $0x9a]]
    %v663 = vstv %s662
    %v664 = vmul.f32 %v147, %v663
    %s665 = sld [smem:[#allocation2 + $0x9b]]
    %v666 = vstv %s665
    %v667 = vmul.f32 %v170, %v666
    %s668 = sld [smem:[#allocation2 + $0x9c]]
    %v669 = vstv %s668
    %v670 = vmul.f32 %v193, %v669
    %s671 = sld [smem:[#allocation2 + $0x9d]]
    %v672 = vstv %s671
    %v673 = vmul.f32 %v216, %v672
    %s674 = sld [smem:[#allocation2 + $0x9e]]
    %v675 = vstv %s674
    %v676 = vmul.f32 %v239, %v675
    %s677 = sld [smem:[#allocation2 + $0x9f]]
    %v678 = vstv %s677
    %v679 = vmul.f32 %v262, %v678
    %v680 = vadd.f32 %v652, %v655
    %v681 = vadd.f32 %v658, %v661
    %v682 = vadd.f32 %v664, %v667
    %v683 = vadd.f32 %v670, %v673
    %v684 = vadd.f32 %v676, %v679
    %v685 = vadd.f32 %v680, %v681
    %v686 = vadd.f32 %v682, %v683
    %v687 = vadd.f32 %v685, %v686
    %v688 = vadd.f32 %v687, %v684
    %s689 = sld [smem:[#allocation2 + $0xa9]]
    %v690 = vstv %s689
    %v691 = vadd.f32 %v688, %v690
    %v692 = vmax.f32 %v691, 0.0
    %s693 = sld [smem:[#allocation2 + $0xaa]]
    %v694 = vstv %s693
    %v695 = vmul.f32 %v305, %v694
    %s696 = sld [smem:[#allocation2 + $0xab]]
    %v697 = vstv %s696
    %v698 = vmul.f32 %v348, %v697
    %s699 = sld [smem:[#allocation2 + $0xac]]
    %v700 = vstv %s699
    %v701 = vmul.f32 %v391, %v700
    %s702 = sld [smem:[#allocation2 + $0xad]]
    %v703 = vstv %s702
    %v704 = vmul.f32 %v434, %v703
    %s705 = sld [smem:[#allocation2 + $0xae]]
    %v706 = vstv %s705
    %v707 = vmul.f32 %v477, %v706
    %s708 = sld [smem:[#allocation2 + $0xaf]]
    %v709 = vstv %s708
    %v710 = vmul.f32 %v520, %v709
    %s711 = sld [smem:[#allocation2 + $0xb0]]
    %v712 = vstv %s711
    %v713 = vmul.f32 %v563, %v712
    %s714 = sld [smem:[#allocation2 + $0xb1]]
    %v715 = vstv %s714
    %v716 = vmul.f32 %v606, %v715
    %s717 = sld [smem:[#allocation2 + $0xb2]]
    %v718 = vstv %s717
    %v719 = vmul.f32 %v649, %v718
    %s720 = sld [smem:[#allocation2 + $0xb3]]
    %v721 = vstv %s720
    %v722 = vmul.f32 %v692, %v721
    %v723 = vadd.f32 %v695, %v698
    %v724 = vadd.f32 %v701, %v704
    %v725 = vadd.f32 %v707, %v710
    %v726 = vadd.f32 %v713, %v716
    %v727 = vadd.f32 %v719, %v722
    %v728 = vadd.f32 %v723, %v724
    %v729 = vadd.f32 %v725, %v726
    %v730 = vadd.f32 %v728, %v729
    %v731 = vadd.f32 %v730, %v727
    %s732 = sld [smem:[#allocation2 + $0xbe]]
    %v733 = vstv %s732
    %v734 = vadd.f32 %v731, %v733
    %v735 = vtanh.pop %v734
    %s736 = sld [smem:[#allocation2 + $0xb4]]
    %v737 = vstv %s736
    %v738 = vmul.f32 %v305, %v737
    %s739 = sld [smem:[#allocation2 + $0xb5]]
    %v740 = vstv %s739
    %v741 = vmul.f32 %v348, %v740
    %s742 = sld [smem:[#allocation2 + $0xb6]]
    %v743 = vstv %s742
    %v744 = vmul.f32 %v391, %v743
    %s745 = sld [smem:[#allocation2 + $0xb7]]
    %v746 = vstv %s745
    %v747 = vmul.f32 %v434, %v746
    %s748 = sld [smem:[#allocation2 + $0xb8]]
    %v749 = vstv %s748
    %v750 = vmul.f32 %v477, %v749
    %s751 = sld [smem:[#allocation2 + $0xb9]]
    %v752 = vstv %s751
    %v753 = vmul.f32 %v520, %v752
    %s754 = sld [smem:[#allocation2 + $0xba]]
    %v755 = vstv %s754
    %v756 = vmul.f32 %v563, %v755
    %s757 = sld [smem:[#allocation2 + $0xbb]]
    %v758 = vstv %s757
    %v759 = vmul.f32 %v606, %v758
    %s760 = sld [smem:[#allocation2 + $0xbc]]
    %v761 = vstv %s760
    %v762 = vmul.f32 %v649, %v761
    %s763 = sld [smem:[#allocation2 + $0xbd]]
    %v764 = vstv %s763
    %v765 = vmul.f32 %v692, %v764
    %v766 = vadd.f32 %v738, %v741
    %v767 = vadd.f32 %v744, %v747
    %v768 = vadd.f32 %v750, %v753
    %v769 = vadd.f32 %v756, %v759
    %v770 = vadd.f32 %v762, %v765
    %v771 = vadd.f32 %v766, %v767
    %v772 = vadd.f32 %v768, %v769
    %v773 = vadd.f32 %v771, %v772
    %v774 = vadd.f32 %v773, %v770
    %s775 = sld [smem:[#allocation2 + $0xbf]]
    %v776 = vstv %s775
    %v777 = vadd.f32 %v774, %v776
    %v778 = vtanh.pop %v777
    %s779 = sld [smem:[#allocation2 + $0xc0]]
    %v780 = vstv %s779
    %v781 = vmul.f32 %v735, %v780
    %782 = vst [vmem:[%s2] sm:$0xff] %v781
    %s783 = sld [smem:[#allocation2 + $0xc1]]
    %v784 = vstv %s783
    %v785 = vmul.f32 %v778, %v784
    %s786 = scalar_lea.vmem %s2, 8
    %787 = vst [vmem:[%s786] sm:$0xff] %v785
    // Predicated region
    $region14: #{neural_network_forward.1} parent=1 // pred_check
      _
    $region15: #{neural_network_forward.1} parent=1 // pred_check_branch
      %789 = sbr.rel (0) target = $region17
    $region16: #{neural_network_forward.1} parent=1 // pred_region
      _
    $region17: #{neural_network_forward.1} parent=1 // pred_fallthru
      _
    // Predicated region
    $region18: #{neural_network_forward.1} parent=1 // pred_check
      _
    $region19: #{neural_network_forward.1} parent=1 // pred_check_branch
      %791 = sbr.rel (0) target = $region21
    $region20: #{neural_network_forward.1} parent=1 // pred_region
      _
    $region21: #{neural_network_forward.1} parent=1 // pred_fallthru
      _
    %792 = vsyncpa [#allocation3], 1

</llo_original>
